<compile_context>
chip_gen: v5e
topology: v5e:2x2
jax: 0.10.0
libtpu: 0.0.40
codegen_flags: <defaults>
</compile_context>

<pallas_src>
import functools
import math

import jax
import jax.numpy as jnp
from jax import lax
from jax.experimental import pallas as pl
from jax.experimental.pallas import tpu as pltpu


# --------------------------------------------------------------------------
# helpers
# --------------------------------------------------------------------------
def _vmem_limit_bytes():
    """Generation-aware VMEM limit: ~75% of physical, capped at 100 MiB."""
    cap = 64 * 1024 * 1024  # conservative default (v7x physical per-TC VMEM)
    try:
        info = pltpu.get_tpu_info()
        cap = int(getattr(info, "vmem_capacity_bytes", cap)) or cap
    except Exception:
        pass
    return min((cap * 3) // 4, 100 * 1024 * 1024)


def _row_block(M, cap):
    """Largest row tile <= cap dividing M; prefer 256-aligned, then 8-aligned."""
    if M <= cap:
        return M
    for align in (256, 8, 1):
        t = (cap // align) * align
        while t >= align:
            if M % t == 0:
                return t
            t -= align
    return M


def _const_spec(shape, single_buffer=True):
    """BlockSpec for an operand whose block index never changes across the grid."""
    zeros = (0,) * len(shape)
    kwargs = {}
    if single_buffer:
        # constant blocks do not need double-buffering
        kwargs["pipeline_mode"] = pl.Buffered(buffer_count=1)
    return pl.BlockSpec(shape, lambda *_: zeros, **kwargs)


def _ln_f32(x, a, b, eps):
    """torch-style LayerNorm: unbiased std, eps added to std (stats in f32)."""
    D = x.shape[-1]
    mean = jnp.mean(x, axis=-1, keepdims=True)
    d = x - mean
    var = jnp.sum(d * d, axis=-1, keepdims=True) * (1.0 / (D - 1))
    std = jnp.sqrt(var)
    return a * d * pl.reciprocal(std + eps) + b   # exact reciprocal (EUP)


# --------------------------------------------------------------------------
# Kernel A: LN1 + fused QKV projection + multi-head attention + Wo + residual
#   one grid step == one batch element; per-head results are accumulated
#   directly through the per-head Wo slice (no k.T, no concatenate), output
#   written lane-dense as (S, D).
# --------------------------------------------------------------------------
def _attn_block_kernel(x_ref, ln_a_ref, ln_b_ref, wqkv_ref, bqkv_ref,
                       wo_ref, bo_ref, o_ref, *, n_heads, eps):
    x = x_ref[...].astype(jnp.float32)                       # (S, D)
    D = x.shape[-1]
    dk = D // n_heads
    scale = 1.0 / math.sqrt(dk)

    xn = _ln_f32(x, ln_a_ref[...], ln_b_ref[...], eps).astype(jnp.bfloat16)

    # one wide [S,D] @ [D,3D] bf16 matmul for Q,K,V (f32 accumulate)
    qkv = (jnp.dot(xn, wqkv_ref[...], preferred_element_type=jnp.float32)
           + bqkv_ref[...]).astype(jnp.bfloat16)             # (S, 3D)

    # TODO(synk): attention mask (masked_fill(mask == 0, -1e9)) not implemented;
    # Encoder.forward default call path uses mask=None.
    # TODO(synk): for long sequences, replace with flash-style query/KV tiling
    # (online softmax) so VMEM use is bounded independent of S.
    acc = x + bo_ref[...]                                    # residual + out bias
    for h in range(n_heads):                                 # static unroll
        q = qkv[:, h * dk:(h + 1) * dk]
        k = qkv[:, D + h * dk:D + (h + 1) * dk]
        v = qkv[:, 2 * D + h * dk:2 * D + (h + 1) * dk]
        # scores: contract last dims of q and k (no explicit transpose)
        s = lax.dot_general(q, k, (((1,), (1,)), ((), ())),
                            preferred_element_type=jnp.float32) * scale
        m = jnp.max(s, axis=-1, keepdims=True)
        e = jnp.exp(s - m)
        p = e * pl.reciprocal(jnp.sum(e, axis=-1, keepdims=True))
        o_h = jnp.dot(p.astype(jnp.bfloat16), v,
                      preferred_element_type=jnp.float32)    # (S, dk)
        # accumulate through this head's slice of Wo -> no concat, bounded live ranges
        acc = acc + jnp.dot(o_h.astype(jnp.bfloat16), wo_ref[h],
                            preferred_element_type=jnp.float32)
    o_ref[...] = acc.astype(o_ref.dtype)


def attention_block(x, lp, n_heads, eps=1e-6, single_buffer=True):
    B, S, D = x.shape
    cs = functools.partial(_const_spec, single_buffer=single_buffer)
    # NOTE: grid=(B,) is 'parallel'; with B >= 2 both v7x TensorCores get work.
    # TODO(synk): for B == 1 on v7x, also tile the query axis to expose >= 2 steps.
    return pl.pallas_call(
        functools.partial(_attn_block_kernel, n_heads=n_heads, eps=eps),
        out_shape=jax.ShapeDtypeStruct((B, S, D), x.dtype),
        grid=(B,),
        in_specs=[
            pl.BlockSpec((None, S, D), lambda b: (b, 0, 0)),
            cs((1, D)), cs((1, D)),                # ln1 a, b
            cs((D, 3 * D)), cs((1, 3 * D)),        # wqkv (bf16), bqkv
            cs(lp["wo"].shape), cs((1, D)),        # wo (H,dk,D bf16), bo
        ],
        out_specs=pl.BlockSpec((None, S, D), lambda b: (b, 0, 0)),
        compiler_params=pltpu.CompilerParams(
            dimension_semantics=("parallel",),
            vmem_limit_bytes=_vmem_limit_bytes()),
    )(x, lp["ln1_a"].reshape(1, D), lp["ln1_b"].reshape(1, D),
      lp["wqkv"], lp["bqkv"].reshape(1, 3 * D),
      lp["wo"], lp["bo"].reshape(1, D))


# --------------------------------------------------------------------------
# Kernel B: LN2 + FFN (relu) + residual, row-tiled over M = B*S.
# Optionally applies the final Encoder.norm in the epilogue (last layer).
# --------------------------------------------------------------------------
def _ffn_block_kernel(x_ref, ln_a_ref, ln_b_ref, w1_ref, b1_ref,
                      w2_ref, b2_ref, *rest, eps, fuse_final_ln):
    if fuse_final_ln:
        fa_ref, fb_ref, o_ref = rest
    else:
        (o_ref,) = rest
    x = x_ref[...].astype(jnp.float32)                       # (TM, D)
    xn = _ln_f32(x, ln_a_ref[...], ln_b_ref[...], eps).astype(jnp.bfloat16)
    h = jnp.dot(xn, w1_ref[...], preferred_element_type=jnp.float32) + b1_ref[...]
    h = jnp.maximum(h, 0.0).astype(jnp.bfloat16)             # ReLU; dropout = id
    y = x + jnp.dot(h, w2_ref[...], preferred_element_type=jnp.float32) + b2_ref[...]
    if fuse_final_ln:                                        # fused Encoder.norm
        y = _ln_f32(y, fa_ref[...], fb_ref[...], eps)
    o_ref[...] = y.astype(o_ref.dtype)


def ffn_block(x2d, lp, eps=1e-6, final_ln=None, single_buffer=True):
    M, D = x2d.shape
    F = lp["w1"].shape[1]
    TM = _row_block(M, cap=512)
    cs = functools.partial(_const_spec, single_buffer=single_buffer)
    # TODO(synk): for very large d_ff on v7x, tile over F with an (TM, D) f32
    # accumulator instead of keeping full W1/W2 resident.
    in_specs = [
        pl.BlockSpec((TM, D), lambda i: (i, 0)),
        cs((1, D)), cs((1, D)),                    # ln2 a, b
        cs((D, F)), cs((1, F)),                    # w1 (bf16), b1
        cs((F, D)), cs((1, D)),                    # w2 (bf16), b2
    ]
    operands = [x2d, lp["ln2_a"].reshape(1, D), lp["ln2_b"].reshape(1, D),
                lp["w1"], lp["b1"].reshape(1, F), lp["w2"], lp["b2"].reshape(1, D)]
    fuse = final_ln is not None
    if fuse:
        fa, fb = final_ln
        in_specs += [cs((1, D)), cs((1, D))]
        operands += [fa.reshape(1, D), fb.reshape(1, D)]
    return pl.pallas_call(
        functools.partial(_ffn_block_kernel, eps=eps, fuse_final_ln=fuse),
        out_shape=jax.ShapeDtypeStruct((M, D), x2d.dtype),
        grid=(M // TM,),
        in_specs=in_specs,
        out_specs=pl.BlockSpec((TM, D), lambda i: (i, 0)),
        compiler_params=pltpu.CompilerParams(
            dimension_semantics=("parallel",),
            vmem_limit_bytes=_vmem_limit_bytes()),
    )(*operands)


# --------------------------------------------------------------------------
# Stand-alone Encoder.norm (only used if there are zero layers)
# --------------------------------------------------------------------------
def _layernorm_kernel(x_ref, a_ref, b_ref, o_ref, *, eps):
    x = x_ref[...].astype(jnp.float32)
    o_ref[...] = _ln_f32(x, a_ref[...], b_ref[...], eps).astype(o_ref.dtype)


def layernorm(x2d, a, b, eps=1e-6, single_buffer=True):
    M, D = x2d.shape
    TM = _row_block(M, cap=1024)
    cs = functools.partial(_const_spec, single_buffer=single_buffer)
    return pl.pallas_call(
        functools.partial(_layernorm_kernel, eps=eps),
        out_shape=jax.ShapeDtypeStruct((M, D), x2d.dtype),
        grid=(M // TM,),
        in_specs=[pl.BlockSpec((TM, D), lambda i: (i, 0)), cs((1, D)), cs((1, D))],
        out_specs=pl.BlockSpec((TM, D), lambda i: (i, 0)),
        compiler_params=pltpu.CompilerParams(
            dimension_semantics=("parallel",),
            vmem_limit_bytes=_vmem_limit_bytes()),
    )(x2d, a.reshape(1, D), b.reshape(1, D))


# --------------------------------------------------------------------------
# parameter init (matches nn.Linear default init; QKV weights concatenated,
# matmul weights stored in bf16, biases / LN params in f32)
# --------------------------------------------------------------------------
def _init_linear(key, fan_in, fan_out):
    k1, k2 = jax.random.split(key)
    bound = 1.0 / math.sqrt(fan_in)
    w = jax.random.uniform(k1, (fan_in, fan_out), jnp.float32, -bound, bound)
    b = jax.random.uniform(k2, (fan_out,), jnp.float32, -bound, bound)
    return w, b


def init_encoder_params(key, d_model, n_heads, d_ff, n_layers):
    ks = jax.random.split(key, 6)
    wq, bq = _init_linear(ks[0], d_model, d_model)
    wk, bk = _init_linear(ks[1], d_model, d_model)
    wv, bv = _init_linear(ks[2], d_model, d_model)
    wo, bo = _init_linear(ks[3], d_model, d_model)
    w1, b1 = _init_linear(ks[4], d_model, d_ff)
    w2, b2 = _init_linear(ks[5], d_ff, d_model)
    dk = d_model // n_heads
    layer = {
        "wqkv": jnp.concatenate([wq, wk, wv], axis=1).astype(jnp.bfloat16),
        "bqkv": jnp.concatenate([bq, bk, bv], axis=0),
        "wo": wo.reshape(n_heads, dk, d_model).astype(jnp.bfloat16),
        "bo": bo,
        "w1": w1.astype(jnp.bfloat16), "b1": b1,
        "w2": w2.astype(jnp.bfloat16), "b2": b2,
        "ln1_a": jnp.ones((d_model,), jnp.float32),
        "ln1_b": jnp.zeros((d_model,), jnp.float32),
        "ln2_a": jnp.ones((d_model,), jnp.float32),
        "ln2_b": jnp.zeros((d_model,), jnp.float32),
    }
    # `clones` deep-copies the same layer N times => identical initial params.
    return {"layers": [layer for _ in range(n_layers)],
            "norm_a": jnp.ones((d_model,), jnp.float32),
            "norm_b": jnp.zeros((d_model,), jnp.float32)}


# --------------------------------------------------------------------------
# Encoder forward: 2 pallas_calls per layer; final norm fused into last FFN
# --------------------------------------------------------------------------
def encoder_forward(x, params, n_heads, mask=None, single_buffer_weights=True):
    # TODO(synk): mask handling (masked_fill(mask == 0, -1e9)) not implemented;
    # default Encoder.forward path passes mask=None.
    # TODO(synk): for small D / d_ff, attention + FFN could be fused into a
    # single per-layer kernel (halves activation HBM traffic) when both weight
    # sets + attention intermediates co-reside in (v7x 64 MiB) VMEM.
    B, S, D = x.shape
    layers = params["layers"]
    n = len(layers)
    for li, lp in enumerate(layers):
        x = attention_block(x, lp, n_heads, single_buffer=single_buffer_weights)
        final_ln = (params["norm_a"], params["norm_b"]) if li == n - 1 else None
        x = ffn_block(x.reshape(B * S, D), lp, final_ln=final_ln,
                      single_buffer=single_buffer_weights).reshape(B, S, D)
    if n == 0:
        x = layernorm(x.reshape(B * S, D), params["norm_a"], params["norm_b"],
                      single_buffer=single_buffer_weights).reshape(B, S, D)
    return x


if __name__ == "__main__":
    B, S, D, H, F, N = 2, 8, 32, 4, 64, 2
    key = jax.random.PRNGKey(0)
    kx, kp = jax.random.split(key)
    x = jax.random.normal(kx, (B, S, D), jnp.float32)
    params = init_encoder_params(kp, D, H, F, N)

    try:
        out = encoder_forward(x, params, H, mask=None)
    except Exception:
        # TODO(synk): pipeline_mode=pl.Buffered(1) unsupported on this jax
        # version; fall back to default double-buffered constant blocks.
        out = encoder_forward(x, params, H, mask=None, single_buffer_weights=False)

    jax.block_until_ready(out)
    assert out.shape == (B, S, D) and out.dtype == jnp.float32
    assert bool(jnp.all(jnp.isfinite(out)))
    print("KERNEL_OK")
</pallas_src>

<mosaic_0001>
module attributes {stable_mosaic.version = 11 : i64} {
  func.func @_attn_block_kernel(%arg0: i32, %arg1: memref<1x8x32xf32, #tpu.memory_space<vmem>>, %arg2: memref<1x32xf32, #tpu.memory_space<vmem>>, %arg3: memref<1x32xf32, #tpu.memory_space<vmem>>, %arg4: memref<32x96xbf16, #tpu.memory_space<vmem>>, %arg5: memref<1x96xf32, #tpu.memory_space<vmem>>, %arg6: memref<4x8x32xbf16, #tpu.memory_space<vmem>>, %arg7: memref<1x32xf32, #tpu.memory_space<vmem>>, %arg8: memref<1x8x32xf32, #tpu.memory_space<vmem>>) attributes {dimension_semantics = [#tpu.dimension_semantics<parallel>], iteration_bounds = array<i64: 2>, scalar_prefetch = 0 : i64, scratch_operands = 0 : i64, tpu.core_type = #tpu.core_type<tc>, window_params = [{transform_indices = @transform_0, window_bounds = array<i64: 1, 8, 32>}, {pipeline_mode = #tpu.pipeline_mode<synchronous>, transform_indices = @transform_1, window_bounds = array<i64: 1, 32>}, {pipeline_mode = #tpu.pipeline_mode<synchronous>, transform_indices = @transform_2, window_bounds = array<i64: 1, 32>}, {pipeline_mode = #tpu.pipeline_mode<synchronous>, transform_indices = @transform_3, window_bounds = array<i64: 32, 96>}, {pipeline_mode = #tpu.pipeline_mode<synchronous>, transform_indices = @transform_4, window_bounds = array<i64: 1, 96>}, {pipeline_mode = #tpu.pipeline_mode<synchronous>, transform_indices = @transform_5, window_bounds = array<i64: 4, 8, 32>}, {pipeline_mode = #tpu.pipeline_mode<synchronous>, transform_indices = @transform_6, window_bounds = array<i64: 1, 32>}, {transform_indices = @transform_7, window_bounds = array<i64: 1, 8, 32>}]} {
    %c0 = arith.constant 0 : index
    %c0_0 = arith.constant 0 : index
    %c0_1 = arith.constant 0 : index
    %0 = vector.load %arg1[%c0, %c0_0, %c0_1] : memref<1x8x32xf32, #tpu.memory_space<vmem>>, vector<1x8x32xf32>
    %1 = vector.shape_cast %0 : vector<1x8x32xf32> to vector<8x32xf32>
    %c0_2 = arith.constant 0 : index
    %c0_3 = arith.constant 0 : index
    %2 = vector.load %arg2[%c0_2, %c0_3] : memref<1x32xf32, #tpu.memory_space<vmem>>, vector<1x32xf32>
    %c0_4 = arith.constant 0 : index
    %c0_5 = arith.constant 0 : index
    %3 = vector.load %arg3[%c0_4, %c0_5] : memref<1x32xf32, #tpu.memory_space<vmem>>, vector<1x32xf32>
    %cst = arith.constant dense<0.000000e+00> : vector<8xf32>
    %4 = vector.multi_reduction <add>, %1, %cst [1] : vector<8x32xf32> to vector<8xf32>
    %5 = vector.shape_cast %4 : vector<8xf32> to vector<8x1xf32>
    %cst_6 = arith.constant 3.200000e+01 : f32
    %6 = vector.broadcast %cst_6 : f32 to vector<8x1xf32>
    %7 = arith.divf %5, %6 : vector<8x1xf32>
    %8 = vector.broadcast %7 : vector<8x1xf32> to vector<8x32xf32>
    %9 = arith.subf %1, %8 : vector<8x32xf32>
    %10 = arith.mulf %9, %9 : vector<8x32xf32>
    %cst_7 = arith.constant dense<0.000000e+00> : vector<8xf32>
    %11 = vector.multi_reduction <add>, %10, %cst_7 [1] : vector<8x32xf32> to vector<8xf32>
    %12 = vector.shape_cast %11 : vector<8xf32> to vector<8x1xf32>
    %cst_8 = arith.constant 0.0322580636 : f32
    %13 = vector.broadcast %cst_8 : f32 to vector<8x1xf32>
    %14 = arith.mulf %12, %13 : vector<8x1xf32>
    %15 = math.sqrt %14 : vector<8x1xf32>
    %16 = vector.broadcast %2 : vector<1x32xf32> to vector<8x32xf32>
    %17 = arith.mulf %16, %9 : vector<8x32xf32>
    %cst_9 = arith.constant 9.99999997E-7 : f32
    %18 = vector.broadcast %cst_9 : f32 to vector<8x1xf32>
    %19 = arith.addf %15, %18 : vector<8x1xf32>
    %20 = tpu.reciprocal %19 : vector<8x1xf32> -> vector<8x1xf32>
    %21 = vector.broadcast %20 : vector<8x1xf32> to vector<8x32xf32>
    %22 = arith.mulf %17, %21 : vector<8x32xf32>
    %23 = vector.broadcast %3 : vector<1x32xf32> to vector<8x32xf32>
    %24 = arith.addf %22, %23 : vector<8x32xf32>
    %25 = arith.truncf %24 : vector<8x32xf32> to vector<8x32xbf16>
    %c0_10 = arith.constant 0 : index
    %c0_11 = arith.constant 0 : index
    %26 = vector.load %arg4[%c0_10, %c0_11] : memref<32x96xbf16, #tpu.memory_space<vmem>>, vector<32x96xbf16>
    %cst_12 = arith.constant dense<0.000000e+00> : vector<8x96xf32>
    %27 = tpu.matmul %25, %26, %cst_12 {dimension_numbers = #tpu.dot_dimension_numbers<[1], [0], [0], [1], [0, 0, 1, 1], [], []>} : vector<8x32xbf16>, vector<32x96xbf16>, vector<8x96xf32> -> vector<8x96xf32>
    %c0_13 = arith.constant 0 : index
    %c0_14 = arith.constant 0 : index
    %28 = vector.load %arg5[%c0_13, %c0_14] : memref<1x96xf32, #tpu.memory_space<vmem>>, vector<1x96xf32>
    %29 = vector.broadcast %28 : vector<1x96xf32> to vector<8x96xf32>
    %30 = arith.addf %27, %29 : vector<8x96xf32>
    %31 = arith.truncf %30 : vector<8x96xf32> to vector<8x96xbf16>
    %c0_15 = arith.constant 0 : index
    %c0_16 = arith.constant 0 : index
    %32 = vector.load %arg7[%c0_15, %c0_16] : memref<1x32xf32, #tpu.memory_space<vmem>>, vector<1x32xf32>
    %33 = vector.broadcast %32 : vector<1x32xf32> to vector<8x32xf32>
    %34 = arith.addf %1, %33 : vector<8x32xf32>
    %35 = vector.extract_strided_slice %31 {offsets = [0, 0], sizes = [8, 8], strides = [1, 1]} : vector<8x96xbf16> to vector<8x8xbf16>
    %36 = vector.extract_strided_slice %31 {offsets = [0, 32], sizes = [8, 8], strides = [1, 1]} : vector<8x96xbf16> to vector<8x8xbf16>
    %37 = vector.extract_strided_slice %31 {offsets = [0, 64], sizes = [8, 8], strides = [1, 1]} : vector<8x96xbf16> to vector<8x8xbf16>
    %cst_17 = arith.constant dense<0.000000e+00> : vector<8x8xf32>
    %38 = tpu.matmul %35, %36, %cst_17 {dimension_numbers = #tpu.dot_dimension_numbers<[1], [1], [0], [0], [0, 0, 1, 0], [], []>} : vector<8x8xbf16>, vector<8x8xbf16>, vector<8x8xf32> -> vector<8x8xf32>
    %cst_18 = arith.constant 0.353553385 : f32
    %39 = vector.broadcast %cst_18 : f32 to vector<8x8xf32>
    %40 = arith.mulf %38, %39 : vector<8x8xf32>
    %cst_19 = arith.constant dense<0xFF800000> : vector<8xf32>
    %41 = vector.multi_reduction <maximumf>, %40, %cst_19 [1] : vector<8x8xf32> to vector<8xf32>
    %42 = vector.shape_cast %41 : vector<8xf32> to vector<8x1xf32>
    %43 = vector.broadcast %42 : vector<8x1xf32> to vector<8x8xf32>
    %44 = arith.subf %40, %43 : vector<8x8xf32>
    %45 = math.exp %44 : vector<8x8xf32>
    %cst_20 = arith.constant dense<0.000000e+00> : vector<8xf32>
    %46 = vector.multi_reduction <add>, %45, %cst_20 [1] : vector<8x8xf32> to vector<8xf32>
    %47 = vector.shape_cast %46 : vector<8xf32> to vector<8x1xf32>
    %48 = tpu.reciprocal %47 : vector<8x1xf32> -> vector<8x1xf32>
    %49 = vector.broadcast %48 : vector<8x1xf32> to vector<8x8xf32>
    %50 = arith.mulf %45, %49 : vector<8x8xf32>
    %51 = arith.truncf %50 : vector<8x8xf32> to vector<8x8xbf16>
    %cst_21 = arith.constant dense<0.000000e+00> : vector<8x8xf32>
    %52 = tpu.matmul %51, %37, %cst_21 {dimension_numbers = #tpu.dot_dimension_numbers<[1], [0], [0], [1], [0, 0, 1, 1], [], []>} : vector<8x8xbf16>, vector<8x8xbf16>, vector<8x8xf32> -> vector<8x8xf32>
    %53 = arith.truncf %52 : vector<8x8xf32> to vector<8x8xbf16>
    %c0_22 = arith.constant 0 : index
    %c0_23 = arith.constant 0 : index
    %c0_24 = arith.constant 0 : index
    %54 = vector.load %arg6[%c0_22, %c0_23, %c0_24] : memref<4x8x32xbf16, #tpu.memory_space<vmem>>, vector<1x8x32xbf16>
    %55 = vector.shape_cast %54 : vector<1x8x32xbf16> to vector<8x32xbf16>
    %cst_25 = arith.constant dense<0.000000e+00> : vector<8x32xf32>
    %56 = tpu.matmul %53, %55, %cst_25 {dimension_numbers = #tpu.dot_dimension_numbers<[1], [0], [0], [1], [0, 0, 1, 1], [], []>} : vector<8x8xbf16>, vector<8x32xbf16>, vector<8x32xf32> -> vector<8x32xf32>
    %57 = arith.addf %34, %56 : vector<8x32xf32>
    %58 = vector.extract_strided_slice %31 {offsets = [0, 8], sizes = [8, 8], strides = [1, 1]} : vector<8x96xbf16> to vector<8x8xbf16>
    %59 = vector.extract_strided_slice %31 {offsets = [0, 40], sizes = [8, 8], strides = [1, 1]} : vector<8x96xbf16> to vector<8x8xbf16>
    %60 = vector.extract_strided_slice %31 {offsets = [0, 72], sizes = [8, 8], strides = [1, 1]} : vector<8x96xbf16> to vector<8x8xbf16>
    %cst_26 = arith.constant dense<0.000000e+00> : vector<8x8xf32>
    %61 = tpu.matmul %58, %59, %cst_26 {dimension_numbers = #tpu.dot_dimension_numbers<[1], [1], [0], [0], [0, 0, 1, 0], [], []>} : vector<8x8xbf16>, vector<8x8xbf16>, vector<8x8xf32> -> vector<8x8xf32>
    %cst_27 = arith.constant 0.353553385 : f32
    %62 = vector.broadcast %cst_27 : f32 to vector<8x8xf32>
    %63 = arith.mulf %61, %62 : vector<8x8xf32>
    %cst_28 = arith.constant dense<0xFF800000> : vector<8xf32>
    %64 = vector.multi_reduction <maximumf>, %63, %cst_28 [1] : vector<8x8xf32> to vector<8xf32>
    %65 = vector.shape_cast %64 : vector<8xf32> to vector<8x1xf32>
    %66 = vector.broadcast %65 : vector<8x1xf32> to vector<8x8xf32>
    %67 = arith.subf %63, %66 : vector<8x8xf32>
    %68 = math.exp %67 : vector<8x8xf32>
    %cst_29 = arith.constant dense<0.000000e+00> : vector<8xf32>
    %69 = vector.multi_reduction <add>, %68, %cst_29 [1] : vector<8x8xf32> to vector<8xf32>
    %70 = vector.shape_cast %69 : vector<8xf32> to vector<8x1xf32>
    %71 = tpu.reciprocal %70 : vector<8x1xf32> -> vector<8x1xf32>
    %72 = vector.broadcast %71 : vector<8x1xf32> to vector<8x8xf32>
    %73 = arith.mulf %68, %72 : vector<8x8xf32>
    %74 = arith.truncf %73 : vector<8x8xf32> to vector<8x8xbf16>
    %cst_30 = arith.constant dense<0.000000e+00> : vector<8x8xf32>
    %75 = tpu.matmul %74, %60, %cst_30 {dimension_numbers = #tpu.dot_dimension_numbers<[1], [0], [0], [1], [0, 0, 1, 1], [], []>} : vector<8x8xbf16>, vector<8x8xbf16>, vector<8x8xf32> -> vector<8x8xf32>
    %76 = arith.truncf %75 : vector<8x8xf32> to vector<8x8xbf16>
    %c1 = arith.constant 1 : index
    %c0_31 = arith.constant 0 : index
    %c0_32 = arith.constant 0 : index
    %77 = vector.load %arg6[%c1, %c0_31, %c0_32] : memref<4x8x32xbf16, #tpu.memory_space<vmem>>, vector<1x8x32xbf16>
    %78 = vector.shape_cast %77 : vector<1x8x32xbf16> to vector<8x32xbf16>
    %cst_33 = arith.constant dense<0.000000e+00> : vector<8x32xf32>
    %79 = tpu.matmul %76, %78, %cst_33 {dimension_numbers = #tpu.dot_dimension_numbers<[1], [0], [0], [1], [0, 0, 1, 1], [], []>} : vector<8x8xbf16>, vector<8x32xbf16>, vector<8x32xf32> -> vector<8x32xf32>
    %80 = arith.addf %57, %79 : vector<8x32xf32>
    %81 = vector.extract_strided_slice %31 {offsets = [0, 16], sizes = [8, 8], strides = [1, 1]} : vector<8x96xbf16> to vector<8x8xbf16>
    %82 = vector.extract_strided_slice %31 {offsets = [0, 48], sizes = [8, 8], strides = [1, 1]} : vector<8x96xbf16> to vector<8x8xbf16>
    %83 = vector.extract_strided_slice %31 {offsets = [0, 80], sizes = [8, 8], strides = [1, 1]} : vector<8x96xbf16> to vector<8x8xbf16>
    %cst_34 = arith.constant dense<0.000000e+00> : vector<8x8xf32>
    %84 = tpu.matmul %81, %82, %cst_34 {dimension_numbers = #tpu.dot_dimension_numbers<[1], [1], [0], [0], [0, 0, 1, 0], [], []>} : vector<8x8xbf16>, vector<8x8xbf16>, vector<8x8xf32> -> vector<8x8xf32>
    %cst_35 = arith.constant 0.353553385 : f32
    %85 = vector.broadcast %cst_35 : f32 to vector<8x8xf32>
    %86 = arith.mulf %84, %85 : vector<8x8xf32>
    %cst_36 = arith.constant dense<0xFF800000> : vector<8xf32>
    %87 = vector.multi_reduction <maximumf>, %86, %cst_36 [1] : vector<8x8xf32> to vector<8xf32>
    %88 = vector.shape_cast %87 : vector<8xf32> to vector<8x1xf32>
    %89 = vector.broadcast %88 : vector<8x1xf32> to vector<8x8xf32>
    %90 = arith.subf %86, %89 : vector<8x8xf32>
    %91 = math.exp %90 : vector<8x8xf32>
    %cst_37 = arith.constant dense<0.000000e+00> : vector<8xf32>
    %92 = vector.multi_reduction <add>, %91, %cst_37 [1] : vector<8x8xf32> to vector<8xf32>
    %93 = vector.shape_cast %92 : vector<8xf32> to vector<8x1xf32>
    %94 = tpu.reciprocal %93 : vector<8x1xf32> -> vector<8x1xf32>
    %95 = vector.broadcast %94 : vector<8x1xf32> to vector<8x8xf32>
    %96 = arith.mulf %91, %95 : vector<8x8xf32>
    %97 = arith.truncf %96 : vector<8x8xf32> to vector<8x8xbf16>
    %cst_38 = arith.constant dense<0.000000e+00> : vector<8x8xf32>
    %98 = tpu.matmul %97, %83, %cst_38 {dimension_numbers = #tpu.dot_dimension_numbers<[1], [0], [0], [1], [0, 0, 1, 1], [], []>} : vector<8x8xbf16>, vector<8x8xbf16>, vector<8x8xf32> -> vector<8x8xf32>
    %99 = arith.truncf %98 : vector<8x8xf32> to vector<8x8xbf16>
    %c2 = arith.constant 2 : index
    %c0_39 = arith.constant 0 : index
    %c0_40 = arith.constant 0 : index
    %100 = vector.load %arg6[%c2, %c0_39, %c0_40] : memref<4x8x32xbf16, #tpu.memory_space<vmem>>, vector<1x8x32xbf16>
    %101 = vector.shape_cast %100 : vector<1x8x32xbf16> to vector<8x32xbf16>
    %cst_41 = arith.constant dense<0.000000e+00> : vector<8x32xf32>
    %102 = tpu.matmul %99, %101, %cst_41 {dimension_numbers = #tpu.dot_dimension_numbers<[1], [0], [0], [1], [0, 0, 1, 1], [], []>} : vector<8x8xbf16>, vector<8x32xbf16>, vector<8x32xf32> -> vector<8x32xf32>
    %103 = arith.addf %80, %102 : vector<8x32xf32>
    %104 = vector.extract_strided_slice %31 {offsets = [0, 24], sizes = [8, 8], strides = [1, 1]} : vector<8x96xbf16> to vector<8x8xbf16>
    %105 = vector.extract_strided_slice %31 {offsets = [0, 56], sizes = [8, 8], strides = [1, 1]} : vector<8x96xbf16> to vector<8x8xbf16>
    %106 = vector.extract_strided_slice %31 {offsets = [0, 88], sizes = [8, 8], strides = [1, 1]} : vector<8x96xbf16> to vector<8x8xbf16>
    %cst_42 = arith.constant dense<0.000000e+00> : vector<8x8xf32>
    %107 = tpu.matmul %104, %105, %cst_42 {dimension_numbers = #tpu.dot_dimension_numbers<[1], [1], [0], [0], [0, 0, 1, 0], [], []>} : vector<8x8xbf16>, vector<8x8xbf16>, vector<8x8xf32> -> vector<8x8xf32>
    %cst_43 = arith.constant 0.353553385 : f32
    %108 = vector.broadcast %cst_43 : f32 to vector<8x8xf32>
    %109 = arith.mulf %107, %108 : vector<8x8xf32>
    %cst_44 = arith.constant dense<0xFF800000> : vector<8xf32>
    %110 = vector.multi_reduction <maximumf>, %109, %cst_44 [1] : vector<8x8xf32> to vector<8xf32>
    %111 = vector.shape_cast %110 : vector<8xf32> to vector<8x1xf32>
    %112 = vector.broadcast %111 : vector<8x1xf32> to vector<8x8xf32>
    %113 = arith.subf %109, %112 : vector<8x8xf32>
    %114 = math.exp %113 : vector<8x8xf32>
    %cst_45 = arith.constant dense<0.000000e+00> : vector<8xf32>
    %115 = vector.multi_reduction <add>, %114, %cst_45 [1] : vector<8x8xf32> to vector<8xf32>
    %116 = vector.shape_cast %115 : vector<8xf32> to vector<8x1xf32>
    %117 = tpu.reciprocal %116 : vector<8x1xf32> -> vector<8x1xf32>
    %118 = vector.broadcast %117 : vector<8x1xf32> to vector<8x8xf32>
    %119 = arith.mulf %114, %118 : vector<8x8xf32>
    %120 = arith.truncf %119 : vector<8x8xf32> to vector<8x8xbf16>
    %cst_46 = arith.constant dense<0.000000e+00> : vector<8x8xf32>
    %121 = tpu.matmul %120, %106, %cst_46 {dimension_numbers = #tpu.dot_dimension_numbers<[1], [0], [0], [1], [0, 0, 1, 1], [], []>} : vector<8x8xbf16>, vector<8x8xbf16>, vector<8x8xf32> -> vector<8x8xf32>
    %122 = arith.truncf %121 : vector<8x8xf32> to vector<8x8xbf16>
    %c3 = arith.constant 3 : index
    %c0_47 = arith.constant 0 : index
    %c0_48 = arith.constant 0 : index
    %123 = vector.load %arg6[%c3, %c0_47, %c0_48] : memref<4x8x32xbf16, #tpu.memory_space<vmem>>, vector<1x8x32xbf16>
    %124 = vector.shape_cast %123 : vector<1x8x32xbf16> to vector<8x32xbf16>
    %cst_49 = arith.constant dense<0.000000e+00> : vector<8x32xf32>
    %125 = tpu.matmul %122, %124, %cst_49 {dimension_numbers = #tpu.dot_dimension_numbers<[1], [0], [0], [1], [0, 0, 1, 1], [], []>} : vector<8x8xbf16>, vector<8x32xbf16>, vector<8x32xf32> -> vector<8x32xf32>
    %126 = arith.addf %103, %125 : vector<8x32xf32>
    %c0_50 = arith.constant 0 : index
    %c0_51 = arith.constant 0 : index
    %c0_52 = arith.constant 0 : index
    %127 = vector.load %arg8[%c0_50, %c0_51, %c0_52] : memref<1x8x32xf32, #tpu.memory_space<vmem>>, vector<1x8x32xf32>
    %128 = vector.shape_cast %127 : vector<1x8x32xf32> to vector<8x32xf32>
    %129 = vector.shape_cast %126 : vector<8x32xf32> to vector<1x8x32xf32>
    tpu.vector_store %arg8[%c0_50, %c0_51, %c0_52], %129 {strides = array<i32>} : memref<1x8x32xf32, #tpu.memory_space<vmem>>, vector<1x8x32xf32>,
    return
  }
  func.func @transform_0(%arg0: i32) -> (i32, i32, i32) {
    %c0_i32 = arith.constant 0 : i32
    %c0_i32_0 = arith.constant 0 : i32
    %c0_i32_1 = arith.constant 0 : i32
    return %arg0, %c0_i32, %c0_i32_0 : i32, i32, i32
  }
  func.func @transform_1(%arg0: i32) -> (i32, i32) {
    %c0_i32 = arith.constant 0 : i32
    %c0_i32_0 = arith.constant 0 : i32
    %c0_i32_1 = arith.constant 0 : i32
    return %c0_i32, %c0_i32_0 : i32, i32
  }
  func.func @transform_2(%arg0: i32) -> (i32, i32) {
    %c0_i32 = arith.constant 0 : i32
    %c0_i32_0 = arith.constant 0 : i32
    %c0_i32_1 = arith.constant 0 : i32
    return %c0_i32, %c0_i32_0 : i32, i32
  }
  func.func @transform_3(%arg0: i32) -> (i32, i32) {
    %c0_i32 = arith.constant 0 : i32
    %c0_i32_0 = arith.constant 0 : i32
    %c0_i32_1 = arith.constant 0 : i32
    return %c0_i32, %c0_i32_0 : i32, i32
  }
  func.func @transform_4(%arg0: i32) -> (i32, i32) {
    %c0_i32 = arith.constant 0 : i32
    %c0_i32_0 = arith.constant 0 : i32
    %c0_i32_1 = arith.constant 0 : i32
    return %c0_i32, %c0_i32_0 : i32, i32
  }
  func.func @transform_5(%arg0: i32) -> (i32, i32, i32) {
    %c0_i32 = arith.constant 0 : i32
    %c0_i32_0 = arith.constant 0 : i32
    %c0_i32_1 = arith.constant 0 : i32
    %c0_i32_2 = arith.constant 0 : i32
    return %c0_i32, %c0_i32_0, %c0_i32_1 : i32, i32, i32
  }
  func.func @transform_6(%arg0: i32) -> (i32, i32) {
    %c0_i32 = arith.constant 0 : i32
    %c0_i32_0 = arith.constant 0 : i32
    %c0_i32_1 = arith.constant 0 : i32
    return %c0_i32, %c0_i32_0 : i32, i32
  }
  func.func @transform_7(%arg0: i32) -> (i32, i32, i32) {
    %c0_i32 = arith.constant 0 : i32
    %c0_i32_0 = arith.constant 0 : i32
    %c0_i32_1 = arith.constant 0 : i32
    return %arg0, %c0_i32, %c0_i32_0 : i32, i32, i32
  }
}

module attributes {stable_mosaic.version = 11 : i64} {
  func.func @_attn_block_kernel(%arg0: i32, %arg1: memref<1x8x32xf32, #tpu.memory_space<vmem>>, %arg2: memref<1x32xf32, #tpu.memory_space<vmem>>, %arg3: memref<1x32xf32, #tpu.memory_space<vmem>>, %arg4: memref<32x96xbf16, #tpu.memory_space<vmem>>, %arg5: memref<1x96xf32, #tpu.memory_space<vmem>>, %arg6: memref<4x8x32xbf16, #tpu.memory_space<vmem>>, %arg7: memref<1x32xf32, #tpu.memory_space<vmem>>, %arg8: memref<1x8x32xf32, #tpu.memory_space<vmem>>) attributes {dimension_semantics = [#tpu.dimension_semantics<parallel>], iteration_bounds = array<i64: 2>, scalar_prefetch = 0 : i64, scratch_operands = 0 : i64, tpu.core_type = #tpu.core_type<tc>, window_params = [{transform_indices = @transform_0, window_bounds = array<i64: 1, 8, 32>}, {pipeline_mode = #tpu.pipeline_mode<synchronous>, transform_indices = @transform_1, window_bounds = array<i64: 1, 32>}, {pipeline_mode = #tpu.pipeline_mode<synchronous>, transform_indices = @transform_2, window_bounds = array<i64: 1, 32>}, {pipeline_mode = #tpu.pipeline_mode<synchronous>, transform_indices = @transform_3, window_bounds = array<i64: 32, 96>}, {pipeline_mode = #tpu.pipeline_mode<synchronous>, transform_indices = @transform_4, window_bounds = array<i64: 1, 96>}, {pipeline_mode = #tpu.pipeline_mode<synchronous>, transform_indices = @transform_5, window_bounds = array<i64: 4, 8, 32>}, {pipeline_mode = #tpu.pipeline_mode<synchronous>, transform_indices = @transform_6, window_bounds = array<i64: 1, 32>}, {transform_indices = @transform_7, window_bounds = array<i64: 1, 8, 32>}]} {
    %c0 = arith.constant 0 : index
    %c0_0 = arith.constant 0 : index
    %c0_1 = arith.constant 0 : index
    %0 = vector.load %arg1[%c0, %c0_0, %c0_1] : memref<1x8x32xf32, #tpu.memory_space<vmem>>, vector<1x8x32xf32>
    %1 = vector.shape_cast %0 : vector<1x8x32xf32> to vector<8x32xf32>
    %c0_2 = arith.constant 0 : index
    %c0_3 = arith.constant 0 : index
    %2 = vector.load %arg2[%c0_2, %c0_3] : memref<1x32xf32, #tpu.memory_space<vmem>>, vector<1x32xf32>
    %c0_4 = arith.constant 0 : index
    %c0_5 = arith.constant 0 : index
    %3 = vector.load %arg3[%c0_4, %c0_5] : memref<1x32xf32, #tpu.memory_space<vmem>>, vector<1x32xf32>
    %cst = arith.constant dense<0.000000e+00> : vector<8xf32>
    %4 = vector.multi_reduction <add>, %1, %cst [1] : vector<8x32xf32> to vector<8xf32>
    %5 = vector.shape_cast %4 : vector<8xf32> to vector<8x1xf32>
    %cst_6 = arith.constant 3.200000e+01 : f32
    %6 = vector.broadcast %cst_6 : f32 to vector<8x1xf32>
    %7 = arith.divf %5, %6 : vector<8x1xf32>
    %8 = vector.broadcast %7 : vector<8x1xf32> to vector<8x32xf32>
    %9 = arith.subf %1, %8 : vector<8x32xf32>
    %10 = arith.mulf %9, %9 : vector<8x32xf32>
    %cst_7 = arith.constant dense<0.000000e+00> : vector<8xf32>
    %11 = vector.multi_reduction <add>, %10, %cst_7 [1] : vector<8x32xf32> to vector<8xf32>
    %12 = vector.shape_cast %11 : vector<8xf32> to vector<8x1xf32>
    %cst_8 = arith.constant 0.0322580636 : f32
    %13 = vector.broadcast %cst_8 : f32 to vector<8x1xf32>
    %14 = arith.mulf %12, %13 : vector<8x1xf32>
    %15 = math.sqrt %14 : vector<8x1xf32>
    %16 = vector.broadcast %2 : vector<1x32xf32> to vector<8x32xf32>
    %17 = arith.mulf %16, %9 : vector<8x32xf32>
    %cst_9 = arith.constant 9.99999997E-7 : f32
    %18 = vector.broadcast %cst_9 : f32 to vector<8x1xf32>
    %19 = arith.addf %15, %18 : vector<8x1xf32>
    %20 = tpu.reciprocal %19 : vector<8x1xf32> -> vector<8x1xf32>
    %21 = vector.broadcast %20 : vector<8x1xf32> to vector<8x32xf32>
    %22 = arith.mulf %17, %21 : vector<8x32xf32>
    %23 = vector.broadcast %3 : vector<1x32xf32> to vector<8x32xf32>
    %24 = arith.addf %22, %23 : vector<8x32xf32>
    %25 = arith.truncf %24 : vector<8x32xf32> to vector<8x32xbf16>
    %c0_10 = arith.constant 0 : index
    %c0_11 = arith.constant 0 : index
    %26 = vector.load %arg4[%c0_10, %c0_11] : memref<32x96xbf16, #tpu.memory_space<vmem>>, vector<32x96xbf16>
    %cst_12 = arith.constant dense<0.000000e+00> : vector<8x96xf32>
    %27 = tpu.matmul %25, %26, %cst_12 {dimension_numbers = #tpu.dot_dimension_numbers<[1], [0], [0], [1], [0, 0, 1, 1], [], []>} : vector<8x32xbf16>, vector<32x96xbf16>, vector<8x96xf32> -> vector<8x96xf32>
    %c0_13 = arith.constant 0 : index
    %c0_14 = arith.constant 0 : index
    %28 = vector.load %arg5[%c0_13, %c0_14] : memref<1x96xf32, #tpu.memory_space<vmem>>, vector<1x96xf32>
    %29 = vector.broadcast %28 : vector<1x96xf32> to vector<8x96xf32>
    %30 = arith.addf %27, %29 : vector<8x96xf32>
    %31 = arith.truncf %30 : vector<8x96xf32> to vector<8x96xbf16>
    %c0_15 = arith.constant 0 : index
    %c0_16 = arith.constant 0 : index
    %32 = vector.load %arg7[%c0_15, %c0_16] : memref<1x32xf32, #tpu.memory_space<vmem>>, vector<1x32xf32>
    %33 = vector.broadcast %32 : vector<1x32xf32> to vector<8x32xf32>
    %34 = arith.addf %1, %33 : vector<8x32xf32>
    %35 = vector.extract_strided_slice %31 {offsets = [0, 0], sizes = [8, 8], strides = [1, 1]} : vector<8x96xbf16> to vector<8x8xbf16>
    %36 = vector.extract_strided_slice %31 {offsets = [0, 32], sizes = [8, 8], strides = [1, 1]} : vector<8x96xbf16> to vector<8x8xbf16>
    %37 = vector.extract_strided_slice %31 {offsets = [0, 64], sizes = [8, 8], strides = [1, 1]} : vector<8x96xbf16> to vector<8x8xbf16>
    %cst_17 = arith.constant dense<0.000000e+00> : vector<8x8xf32>
    %38 = tpu.matmul %35, %36, %cst_17 {dimension_numbers = #tpu.dot_dimension_numbers<[1], [1], [0], [0], [0, 0, 1, 0], [], []>} : vector<8x8xbf16>, vector<8x8xbf16>, vector<8x8xf32> -> vector<8x8xf32>
    %cst_18 = arith.constant 0.353553385 : f32
    %39 = vector.broadcast %cst_18 : f32 to vector<8x8xf32>
    %40 = arith.mulf %38, %39 : vector<8x8xf32>
    %cst_19 = arith.constant dense<0xFF800000> : vector<8xf32>
    %41 = vector.multi_reduction <maximumf>, %40, %cst_19 [1] : vector<8x8xf32> to vector<8xf32>
    %42 = vector.shape_cast %41 : vector<8xf32> to vector<8x1xf32>
    %43 = vector.broadcast %42 : vector<8x1xf32> to vector<8x8xf32>
    %44 = arith.subf %40, %43 : vector<8x8xf32>
    %45 = math.exp %44 : vector<8x8xf32>
    %cst_20 = arith.constant dense<0.000000e+00> : vector<8xf32>
    %46 = vector.multi_reduction <add>, %45, %cst_20 [1] : vector<8x8xf32> to vector<8xf32>
    %47 = vector.shape_cast %46 : vector<8xf32> to vector<8x1xf32>
    %48 = tpu.reciprocal %47 : vector<8x1xf32> -> vector<8x1xf32>
    %49 = vector.broadcast %48 : vector<8x1xf32> to vector<8x8xf32>
    %50 = arith.mulf %45, %49 : vector<8x8xf32>
    %51 = arith.truncf %50 : vector<8x8xf32> to vector<8x8xbf16>
    %cst_21 = arith.constant dense<0.000000e+00> : vector<8x8xf32>
    %52 = tpu.matmul %51, %37, %cst_21 {dimension_numbers = #tpu.dot_dimension_numbers<[1], [0], [0], [1], [0, 0, 1, 1], [], []>} : vector<8x8xbf16>, vector<8x8xbf16>, vector<8x8xf32> -> vector<8x8xf32>
    %53 = arith.truncf %52 : vector<8x8xf32> to vector<8x8xbf16>
    %c0_22 = arith.constant 0 : index
    %c0_23 = arith.constant 0 : index
    %c0_24 = arith.constant 0 : index
    %54 = vector.load %arg6[%c0_22, %c0_23, %c0_24] : memref<4x8x32xbf16, #tpu.memory_space<vmem>>, vector<1x8x32xbf16>
    %55 = vector.shape_cast %54 : vector<1x8x32xbf16> to vector<8x32xbf16>
    %cst_25 = arith.constant dense<0.000000e+00> : vector<8x32xf32>
    %56 = tpu.matmul %53, %55, %cst_25 {dimension_numbers = #tpu.dot_dimension_numbers<[1], [0], [0], [1], [0, 0, 1, 1], [], []>} : vector<8x8xbf16>, vector<8x32xbf16>, vector<8x32xf32> -> vector<8x32xf32>
    %57 = arith.addf %34, %56 : vector<8x32xf32>
    %58 = vector.extract_strided_slice %31 {offsets = [0, 8], sizes = [8, 8], strides = [1, 1]} : vector<8x96xbf16> to vector<8x8xbf16>
    %59 = vector.extract_strided_slice %31 {offsets = [0, 40], sizes = [8, 8], strides = [1, 1]} : vector<8x96xbf16> to vector<8x8xbf16>
    %60 = vector.extract_strided_slice %31 {offsets = [0, 72], sizes = [8, 8], strides = [1, 1]} : vector<8x96xbf16> to vector<8x8xbf16>
    %cst_26 = arith.constant dense<0.000000e+00> : vector<8x8xf32>
    %61 = tpu.matmul %58, %59, %cst_26 {dimension_numbers = #tpu.dot_dimension_numbers<[1], [1], [0], [0], [0, 0, 1, 0], [], []>} : vector<8x8xbf16>, vector<8x8xbf16>, vector<8x8xf32> -> vector<8x8xf32>
    %cst_27 = arith.constant 0.353553385 : f32
    %62 = vector.broadcast %cst_27 : f32 to vector<8x8xf32>
    %63 = arith.mulf %61, %62 : vector<8x8xf32>
    %cst_28 = arith.constant dense<0xFF800000> : vector<8xf32>
    %64 = vector.multi_reduction <maximumf>, %63, %cst_28 [1] : vector<8x8xf32> to vector<8xf32>
    %65 = vector.shape_cast %64 : vector<8xf32> to vector<8x1xf32>
    %66 = vector.broadcast %65 : vector<8x1xf32> to vector<8x8xf32>
    %67 = arith.subf %63, %66 : vector<8x8xf32>
    %68 = math.exp %67 : vector<8x8xf32>
    %cst_29 = arith.constant dense<0.000000e+00> : vector<8xf32>
    %69 = vector.multi_reduction <add>, %68, %cst_29 [1] : vector<8x8xf32> to vector<8xf32>
    %70 = vector.shape_cast %69 : vector<8xf32> to vector<8x1xf32>
    %71 = tpu.reciprocal %70 : vector<8x1xf32> -> vector<8x1xf32>
    %72 = vector.broadcast %71 : vector<8x1xf32> to vector<8x8xf32>
    %73 = arith.mulf %68, %72 : vector<8x8xf32>
    %74 = arith.truncf %73 : vector<8x8xf32> to vector<8x8xbf16>
    %cst_30 = arith.constant dense<0.000000e+00> : vector<8x8xf32>
    %75 = tpu.matmul %74, %60, %cst_30 {dimension_numbers = #tpu.dot_dimension_numbers<[1], [0], [0], [1], [0, 0, 1, 1], [], []>} : vector<8x8xbf16>, vector<8x8xbf16>, vector<8x8xf32> -> vector<8x8xf32>
    %76 = arith.truncf %75 : vector<8x8xf32> to vector<8x8xbf16>
    %c1 = arith.constant 1 : index
    %c0_31 = arith.constant 0 : index
    %c0_32 = arith.constant 0 : index
    %77 = vector.load %arg6[%c1, %c0_31, %c0_32] : memref<4x8x32xbf16, #tpu.memory_space<vmem>>, vector<1x8x32xbf16>
    %78 = vector.shape_cast %77 : vector<1x8x32xbf16> to vector<8x32xbf16>
    %cst_33 = arith.constant dense<0.000000e+00> : vector<8x32xf32>
    %79 = tpu.matmul %76, %78, %cst_33 {dimension_numbers = #tpu.dot_dimension_numbers<[1], [0], [0], [1], [0, 0, 1, 1], [], []>} : vector<8x8xbf16>, vector<8x32xbf16>, vector<8x32xf32> -> vector<8x32xf32>
    %80 = arith.addf %57, %79 : vector<8x32xf32>
    %81 = vector.extract_strided_slice %31 {offsets = [0, 16], sizes = [8, 8], strides = [1, 1]} : vector<8x96xbf16> to vector<8x8xbf16>
    %82 = vector.extract_strided_slice %31 {offsets = [0, 48], sizes = [8, 8], strides = [1, 1]} : vector<8x96xbf16> to vector<8x8xbf16>
    %83 = vector.extract_strided_slice %31 {offsets = [0, 80], sizes = [8, 8], strides = [1, 1]} : vector<8x96xbf16> to vector<8x8xbf16>
    %cst_34 = arith.constant dense<0.000000e+00> : vector<8x8xf32>
    %84 = tpu.matmul %81, %82, %cst_34 {dimension_numbers = #tpu.dot_dimension_numbers<[1], [1], [0], [0], [0, 0, 1, 0], [], []>} : vector<8x8xbf16>, vector<8x8xbf16>, vector<8x8xf32> -> vector<8x8xf32>
    %cst_35 = arith.constant 0.353553385 : f32
    %85 = vector.broadcast %cst_35 : f32 to vector<8x8xf32>
    %86 = arith.mulf %84, %85 : vector<8x8xf32>
    %cst_36 = arith.constant dense<0xFF800000> : vector<8xf32>
    %87 = vector.multi_reduction <maximumf>, %86, %cst_36 [1] : vector<8x8xf32> to vector<8xf32>
    %88 = vector.shape_cast %87 : vector<8xf32> to vector<8x1xf32>
    %89 = vector.broadcast %88 : vector<8x1xf32> to vector<8x8xf32>
    %90 = arith.subf %86, %89 : vector<8x8xf32>
    %91 = math.exp %90 : vector<8x8xf32>
    %cst_37 = arith.constant dense<0.000000e+00> : vector<8xf32>
    %92 = vector.multi_reduction <add>, %91, %cst_37 [1] : vector<8x8xf32> to vector<8xf32>
    %93 = vector.shape_cast %92 : vector<8xf32> to vector<8x1xf32>
    %94 = tpu.reciprocal %93 : vector<8x1xf32> -> vector<8x1xf32>
    %95 = vector.broadcast %94 : vector<8x1xf32> to vector<8x8xf32>
    %96 = arith.mulf %91, %95 : vector<8x8xf32>
    %97 = arith.truncf %96 : vector<8x8xf32> to vector<8x8xbf16>
    %cst_38 = arith.constant dense<0.000000e+00> : vector<8x8xf32>
    %98 = tpu.matmul %97, %83, %cst_38 {dimension_numbers = #tpu.dot_dimension_numbers<[1], [0], [0], [1], [0, 0, 1, 1], [], []>} : vector<8x8xbf16>, vector<8x8xbf16>, vector<8x8xf32> -> vector<8x8xf32>
    %99 = arith.truncf %98 : vector<8x8xf32> to vector<8x8xbf16>
    %c2 = arith.constant 2 : index
    %c0_39 = arith.constant 0 : index
    %c0_40 = arith.constant 0 : index
    %100 = vector.load %arg6[%c2, %c0_39, %c0_40] : memref<4x8x32xbf16, #tpu.memory_space<vmem>>, vector<1x8x32xbf16>
    %101 = vector.shape_cast %100 : vector<1x8x32xbf16> to vector<8x32xbf16>
    %cst_41 = arith.constant dense<0.000000e+00> : vector<8x32xf32>
    %102 = tpu.matmul %99, %101, %cst_41 {dimension_numbers = #tpu.dot_dimension_numbers<[1], [0], [0], [1], [0, 0, 1, 1], [], []>} : vector<8x8xbf16>, vector<8x32xbf16>, vector<8x32xf32> -> vector<8x32xf32>
    %103 = arith.addf %80, %102 : vector<8x32xf32>
    %104 = vector.extract_strided_slice %31 {offsets = [0, 24], sizes = [8, 8], strides = [1, 1]} : vector<8x96xbf16> to vector<8x8xbf16>
    %105 = vector.extract_strided_slice %31 {offsets = [0, 56], sizes = [8, 8], strides = [1, 1]} : vector<8x96xbf16> to vector<8x8xbf16>
    %106 = vector.extract_strided_slice %31 {offsets = [0, 88], sizes = [8, 8], strides = [1, 1]} : vector<8x96xbf16> to vector<8x8xbf16>
    %cst_42 = arith.constant dense<0.000000e+00> : vector<8x8xf32>
    %107 = tpu.matmul %104, %105, %cst_42 {dimension_numbers = #tpu.dot_dimension_numbers<[1], [1], [0], [0], [0, 0, 1, 0], [], []>} : vector<8x8xbf16>, vector<8x8xbf16>, vector<8x8xf32> -> vector<8x8xf32>
    %cst_43 = arith.constant 0.353553385 : f32
    %108 = vector.broadcast %cst_43 : f32 to vector<8x8xf32>
    %109 = arith.mulf %107, %108 : vector<8x8xf32>
    %cst_44 = arith.constant dense<0xFF800000> : vector<8xf32>
    %110 = vector.multi_reduction <maximumf>, %109, %cst_44 [1] : vector<8x8xf32> to vector<8xf32>
    %111 = vector.shape_cast %110 : vector<8xf32> to vector<8x1xf32>
    %112 = vector.broadcast %111 : vector<8x1xf32> to vector<8x8xf32>
    %113 = arith.subf %109, %112 : vector<8x8xf32>
    %114 = math.exp %113 : vector<8x8xf32>
    %cst_45 = arith.constant dense<0.000000e+00> : vector<8xf32>
    %115 = vector.multi_reduction <add>, %114, %cst_45 [1] : vector<8x8xf32> to vector<8xf32>
    %116 = vector.shape_cast %115 : vector<8xf32> to vector<8x1xf32>
    %117 = tpu.reciprocal %116 : vector<8x1xf32> -> vector<8x1xf32>
    %118 = vector.broadcast %117 : vector<8x1xf32> to vector<8x8xf32>
    %119 = arith.mulf %114, %118 : vector<8x8xf32>
    %120 = arith.truncf %119 : vector<8x8xf32> to vector<8x8xbf16>
    %cst_46 = arith.constant dense<0.000000e+00> : vector<8x8xf32>
    %121 = tpu.matmul %120, %106, %cst_46 {dimension_numbers = #tpu.dot_dimension_numbers<[1], [0], [0], [1], [0, 0, 1, 1], [], []>} : vector<8x8xbf16>, vector<8x8xbf16>, vector<8x8xf32> -> vector<8x8xf32>
    %122 = arith.truncf %121 : vector<8x8xf32> to vector<8x8xbf16>
    %c3 = arith.constant 3 : index
    %c0_47 = arith.constant 0 : index
    %c0_48 = arith.constant 0 : index
    %123 = vector.load %arg6[%c3, %c0_47, %c0_48] : memref<4x8x32xbf16, #tpu.memory_space<vmem>>, vector<1x8x32xbf16>
    %124 = vector.shape_cast %123 : vector<1x8x32xbf16> to vector<8x32xbf16>
    %cst_49 = arith.constant dense<0.000000e+00> : vector<8x32xf32>
    %125 = tpu.matmul %122, %124, %cst_49 {dimension_numbers = #tpu.dot_dimension_numbers<[1], [0], [0], [1], [0, 0, 1, 1], [], []>} : vector<8x8xbf16>, vector<8x32xbf16>, vector<8x32xf32> -> vector<8x32xf32>
    %126 = arith.addf %103, %125 : vector<8x32xf32>
    %c0_50 = arith.constant 0 : index
    %c0_51 = arith.constant 0 : index
    %c0_52 = arith.constant 0 : index
    %127 = vector.load %arg8[%c0_50, %c0_51, %c0_52] : memref<1x8x32xf32, #tpu.memory_space<vmem>>, vector<1x8x32xf32>
    %128 = vector.shape_cast %127 : vector<1x8x32xf32> to vector<8x32xf32>
    %129 = vector.shape_cast %126 : vector<8x32xf32> to vector<1x8x32xf32>
    tpu.vector_store %arg8[%c0_50, %c0_51, %c0_52], %129 {strides = array<i32>} : memref<1x8x32xf32, #tpu.memory_space<vmem>>, vector<1x8x32xf32>,
    return
  }
  func.func @transform_0(%arg0: i32) -> (i32, i32, i32) {
    %c0_i32 = arith.constant 0 : i32
    %c0_i32_0 = arith.constant 0 : i32
    %c0_i32_1 = arith.constant 0 : i32
    return %arg0, %c0_i32, %c0_i32_0 : i32, i32, i32
  }
  func.func @transform_1(%arg0: i32) -> (i32, i32) {
    %c0_i32 = arith.constant 0 : i32
    %c0_i32_0 = arith.constant 0 : i32
    %c0_i32_1 = arith.constant 0 : i32
    return %c0_i32, %c0_i32_0 : i32, i32
  }
  func.func @transform_2(%arg0: i32) -> (i32, i32) {
    %c0_i32 = arith.constant 0 : i32
    %c0_i32_0 = arith.constant 0 : i32
    %c0_i32_1 = arith.constant 0 : i32
    return %c0_i32, %c0_i32_0 : i32, i32
  }
  func.func @transform_3(%arg0: i32) -> (i32, i32) {
    %c0_i32 = arith.constant 0 : i32
    %c0_i32_0 = arith.constant 0 : i32
    %c0_i32_1 = arith.constant 0 : i32
    return %c0_i32, %c0_i32_0 : i32, i32
  }
  func.func @transform_4(%arg0: i32) -> (i32, i32) {
    %c0_i32 = arith.constant 0 : i32
    %c0_i32_0 = arith.constant 0 : i32
    %c0_i32_1 = arith.constant 0 : i32
    return %c0_i32, %c0_i32_0 : i32, i32
  }
  func.func @transform_5(%arg0: i32) -> (i32, i32, i32) {
    %c0_i32 = arith.constant 0 : i32
    %c0_i32_0 = arith.constant 0 : i32
    %c0_i32_1 = arith.constant 0 : i32
    %c0_i32_2 = arith.constant 0 : i32
    return %c0_i32, %c0_i32_0, %c0_i32_1 : i32, i32, i32
  }
  func.func @transform_6(%arg0: i32) -> (i32, i32) {
    %c0_i32 = arith.constant 0 : i32
    %c0_i32_0 = arith.constant 0 : i32
    %c0_i32_1 = arith.constant 0 : i32
    return %c0_i32, %c0_i32_0 : i32, i32
  }
  func.func @transform_7(%arg0: i32) -> (i32, i32, i32) {
    %c0_i32 = arith.constant 0 : i32
    %c0_i32_0 = arith.constant 0 : i32
    %c0_i32_1 = arith.constant 0 : i32
    return %arg0, %c0_i32, %c0_i32_0 : i32, i32, i32
  }
}

</mosaic_0001>

<llo_original>
// kernel: tpu_custom_call.1
$region0: #{tpu_custom_call.1}
  #allocation0 [shape = 'u32[]', space=smem, size = 0x4, offset = 0x4, fixed_abs, tag = 'smem constant byte address 0x4 - core index']
  #allocation1 [shape = 'u32[72,128]{1,0:T(1,128)}', space=vmem, size = 0x9000, scoped, tag = 'internal scratch']
  %s0 = inlined_call_operand.hbm [shape: f32[2,8,32], index: 0, kind: input, shape index: {}]
  %s1 = inlined_call_operand.hbm [shape: f32[1,32], index: 1, kind: input, shape index: {}]
  %s2 = inlined_call_operand.vmem [shape: f32[1,32], index: 2, kind: input, shape index: {}]
  %s3 = inlined_call_operand.hbm [shape: bf16[32,96], index: 3, kind: input, shape index: {}]
  %s4 = inlined_call_operand.vmem [shape: f32[1,96], index: 4, kind: input, shape index: {}]
  %s5 = inlined_call_operand.hbm [shape: bf16[4,8,32], index: 5, kind: input, shape index: {}]
  %s6 = inlined_call_operand.vmem [shape: f32[1,32], index: 6, kind: input, shape index: {}]
  %s7 = inlined_call_operand.hbm [shape: f32[2,8,32], index: 7, kind: output, shape index: {}]
  %s8 = sld [smem:[#allocation0]]
  $region77: #{tpu_custom_call.1} parent=0
    _
  %s10 = ssub.s32 1, %s8
  %s11 = scalar_select 0, %s10, %s8
  $region1: #{tpu_custom_call.1} parent=0
    #allocation2 [shape = 'u8[8192]{0}', space=vmem, size = 0x2000, scoped, tag = 'input window, operand 0']
    #allocation3 [shape = 's32[2]{0}', space=sflag, size = 0x8, scoped, tag = 'scoped memory for tpu_custom_call.1']
    #allocation4 [shape = 's32[2]{0}', space=sflag, size = 0x8, scoped, tag = 'scoped memory for tpu_custom_call.1']
    #allocation5 [shape = 'u8[512]{0}', space=vmem, size = 0x400, scoped, tag = 'input window, operand 1, single buffered']
    #allocation6 [shape = 's32[1]{0}', space=sflag, size = 0x4, scoped, tag = 'scoped memory for tpu_custom_call.1']
    #allocation7 [shape = 'u8[8192]{0}', space=vmem, size = 0x2000, scoped, tag = 'input window, operand 3, single buffered']
    #allocation8 [shape = 'u8[8192]{0}', space=vmem, size = 0x2000, scoped, tag = 'input window, operand 5, single buffered']
    #allocation9 [shape = 's32[1]{0}', space=sflag, size = 0x4, scoped, tag = 'scoped memory for tpu_custom_call.1']
    #allocation10 [shape = 'u8[8192]{0}', space=vmem, size = 0x2000, scoped, tag = 'output window, operand 0']
    %12 = vsyncpa [#allocation3], 0
    %s13 = scalar_lea.sflag [#allocation3], 1
    %14 = vsyncpa %s13, 0
    %15 = vsyncpa [#allocation6], 0
    %16 = vsyncpa [#allocation9], 0
    %17 = vsyncpa [#allocation4], 0
    %s18 = scalar_lea.sflag [#allocation4], 1
    %19 = vsyncpa %s18, 0
    loop: start=0, step=1, limit=4
    $region2: #{tpu_custom_call.1} parent=1 // loop_pre_header
      _
    $region3: #{tpu_custom_call.1} parent=1 // loop_header
      %s21 = sphi 0, %s25
      %p22 = scmp.ge.s32.totalorder %s21, 4
      %s31 = sphi 0, %s33
      %s34 = sphi 0, %s31
      %s35 = sphi 0, %s34
      %s51 = sphi 0, %s35
      %s55 = sphi 0, %s55
      %s57 = sphi 0, %s55
      %s58 = sphi 0, %s57
      %s72 = sphi 0, %s58
      %s76 = sphi 0, %s76
      %s78 = sphi 0, %s76
      %s79 = sphi 0, %s78
      %s93 = sphi 0, %s79
      %s97 = sphi 0, %s97
      %s99 = sphi 0, %s97
      %s100 = sphi 0, %s99
      %s114 = sphi 0, %s100
      %s118 = sphi 0, %s118
      %s120 = sphi 0, %s118
      %s121 = sphi 0, %s120
      %s135 = sphi 0, %s121
      %s139 = sphi 0, %s139
      %s141 = sphi 0, %s139
      %s142 = sphi 0, %s141
      %s156 = sphi 0, %s142
      %s160 = sphi 0, %s160
      %s162 = sphi 0, %s160
      %s163 = sphi 0, %s162
      %s177 = sphi 0, %s163
      %s183 = sphi 0, %s185
      %s186 = sphi 0, %s183
      %s187 = sphi 0, %s186
      %s203 = sphi 0, %s187
    $region4: #{tpu_custom_call.1} parent=1 // loop_header_branch
      %24 = sbr.rel (%p22) target = $region8
    $region5: #{tpu_custom_call.1} parent=1 // loop_body
      %s26 = ssub.s32 %s21, 1
      %s27 = ssub.s32 %s21, 2
      %s28 = sadd.s32 %s21, 1
      %s29 = ssub.s32 %s21, %s28
      %p30 = scmp.eq.s32.totalorder %s29, 0
      %s32 = sadd.s32 %s31, 1
      %s33 = scalar_select %p30, %s31, %s32
      %p36 = pneg %p30
      %p37 = scmp.eq.s32.totalorder %s21, 1
      %p38 = por %p36, %p37
      %p39 = scmp.ne.s32.totalorder %s31, %s34
      %p40 = scmp.eq.s32.totalorder %s21, 0
      %p41 = por %p39, %p40
      %p42 = scmp.ne.s32.totalorder %s31, %s34
      %p43 = scmp.eq.s32.totalorder %s26, 1
      %p44 = por %p42, %p43
      %p45 = scmp.ne.s32.totalorder %s34, %s35
      %p46 = scmp.eq.s32.totalorder %s26, 0
      %p47 = por %p45, %p46
      %p48 = scmp.ne.s32.totalorder %s34, %s35
      %p49 = scmp.eq.s32.totalorder %s27, 1
      %p50 = por %p48, %p49
      %p52 = scmp.ne.s32.totalorder %s35, %s51
      %p53 = scmp.eq.s32.totalorder %s27, 0
      %p54 = por %p52, %p53
      %s56 = sadd.s32 %s55, 1
      %p59 = scmp.eq.s32.totalorder %s21, 1
      %p60 = scmp.ne.s32.totalorder %s55, %s57
      %p61 = scmp.eq.s32.totalorder %s21, 0
      %p62 = por %p60, %p61
      %p63 = scmp.ne.s32.totalorder %s55, %s57
      %p64 = scmp.eq.s32.totalorder %s26, 1
      %p65 = por %p63, %p64
      %p66 = scmp.ne.s32.totalorder %s57, %s58
      %p67 = scmp.eq.s32.totalorder %s26, 0
      %p68 = por %p66, %p67
      %p69 = scmp.ne.s32.totalorder %s57, %s58
      %p70 = scmp.eq.s32.totalorder %s27, 1
      %p71 = por %p69, %p70
      %p73 = scmp.ne.s32.totalorder %s58, %s72
      %p74 = scmp.eq.s32.totalorder %s27, 0
      %p75 = por %p73, %p74
      %s77 = sadd.s32 %s76, 1
      %p80 = scmp.eq.s32.totalorder %s21, 1
      %p81 = scmp.ne.s32.totalorder %s76, %s78
      %p82 = scmp.eq.s32.totalorder %s21, 0
      %p83 = por %p81, %p82
      %p84 = scmp.ne.s32.totalorder %s76, %s78
      %p85 = scmp.eq.s32.totalorder %s26, 1
      %p86 = por %p84, %p85
      %p87 = scmp.ne.s32.totalorder %s78, %s79
      %p88 = scmp.eq.s32.totalorder %s26, 0
      %p89 = por %p87, %p88
      %p90 = scmp.ne.s32.totalorder %s78, %s79
      %p91 = scmp.eq.s32.totalorder %s27, 1
      %p92 = por %p90, %p91
      %p94 = scmp.ne.s32.totalorder %s79, %s93
      %p95 = scmp.eq.s32.totalorder %s27, 0
      %p96 = por %p94, %p95
      %s98 = sadd.s32 %s97, 1
      %p101 = scmp.eq.s32.totalorder %s21, 1
      %p102 = scmp.ne.s32.totalorder %s97, %s99
      %p103 = scmp.eq.s32.totalorder %s21, 0
      %p104 = por %p102, %p103
      %p105 = scmp.ne.s32.totalorder %s97, %s99
      %p106 = scmp.eq.s32.totalorder %s26, 1
      %p107 = por %p105, %p106
      %p108 = scmp.ne.s32.totalorder %s99, %s100
      %p109 = scmp.eq.s32.totalorder %s26, 0
      %p110 = por %p108, %p109
      %p111 = scmp.ne.s32.totalorder %s99, %s100
      %p112 = scmp.eq.s32.totalorder %s27, 1
      %p113 = por %p111, %p112
      %p115 = scmp.ne.s32.totalorder %s100, %s114
      %p116 = scmp.eq.s32.totalorder %s27, 0
      %p117 = por %p115, %p116
      %s119 = sadd.s32 %s118, 1
      %p122 = scmp.eq.s32.totalorder %s21, 1
      %p123 = scmp.ne.s32.totalorder %s118, %s120
      %p124 = scmp.eq.s32.totalorder %s21, 0
      %p125 = por %p123, %p124
      %p126 = scmp.ne.s32.totalorder %s118, %s120
      %p127 = scmp.eq.s32.totalorder %s26, 1
      %p128 = por %p126, %p127
      %p129 = scmp.ne.s32.totalorder %s120, %s121
      %p130 = scmp.eq.s32.totalorder %s26, 0
      %p131 = por %p129, %p130
      %p132 = scmp.ne.s32.totalorder %s120, %s121
      %p133 = scmp.eq.s32.totalorder %s27, 1
      %p134 = por %p132, %p133
      %p136 = scmp.ne.s32.totalorder %s121, %s135
      %p137 = scmp.eq.s32.totalorder %s27, 0
      %p138 = por %p136, %p137
      %s140 = sadd.s32 %s139, 1
      %p143 = scmp.eq.s32.totalorder %s21, 1
      %p144 = scmp.ne.s32.totalorder %s139, %s141
      %p145 = scmp.eq.s32.totalorder %s21, 0
      %p146 = por %p144, %p145
      %p147 = scmp.ne.s32.totalorder %s139, %s141
      %p148 = scmp.eq.s32.totalorder %s26, 1
      %p149 = por %p147, %p148
      %p150 = scmp.ne.s32.totalorder %s141, %s142
      %p151 = scmp.eq.s32.totalorder %s26, 0
      %p152 = por %p150, %p151
      %p153 = scmp.ne.s32.totalorder %s141, %s142
      %p154 = scmp.eq.s32.totalorder %s27, 1
      %p155 = por %p153, %p154
      %p157 = scmp.ne.s32.totalorder %s142, %s156
      %p158 = scmp.eq.s32.totalorder %s27, 0
      %p159 = por %p157, %p158
      %s161 = sadd.s32 %s160, 1
      %p164 = scmp.eq.s32.totalorder %s21, 1
      %p165 = scmp.ne.s32.totalorder %s160, %s162
      %p166 = scmp.eq.s32.totalorder %s21, 0
      %p167 = por %p165, %p166
      %p168 = scmp.ne.s32.totalorder %s160, %s162
      %p169 = scmp.eq.s32.totalorder %s26, 1
      %p170 = por %p168, %p169
      %p171 = scmp.ne.s32.totalorder %s162, %s163
      %p172 = scmp.eq.s32.totalorder %s26, 0
      %p173 = por %p171, %p172
      %p174 = scmp.ne.s32.totalorder %s162, %s163
      %p175 = scmp.eq.s32.totalorder %s27, 1
      %p176 = por %p174, %p175
      %p178 = scmp.ne.s32.totalorder %s163, %s177
      %p179 = scmp.eq.s32.totalorder %s27, 0
      %p180 = por %p178, %p179
      %s181 = ssub.s32 %s21, %s28
      %p182 = scmp.eq.s32.totalorder %s181, 0
      %s184 = sadd.s32 %s183, 1
      %s185 = scalar_select %p182, %s183, %s184
      %p188 = pneg %p182
      %p189 = scmp.eq.s32.totalorder %s21, 1
      %p190 = por %p188, %p189
      %p191 = scmp.ne.s32.totalorder %s183, %s186
      %p192 = scmp.eq.s32.totalorder %s21, 0
      %p193 = por %p191, %p192
      %p194 = scmp.ne.s32.totalorder %s183, %s186
      %p195 = scmp.eq.s32.totalorder %s26, 1
      %p196 = por %p194, %p195
      %p197 = scmp.ne.s32.totalorder %s186, %s187
      %p198 = scmp.eq.s32.totalorder %s26, 0
      %p199 = por %p197, %p198
      %p200 = scmp.ne.s32.totalorder %s186, %s187
      %p201 = scmp.eq.s32.totalorder %s27, 1
      %p202 = por %p200, %p201
      %p204 = scmp.ne.s32.totalorder %s187, %s203
      %p205 = scmp.eq.s32.totalorder %s27, 0
      %p206 = por %p204, %p205
      %p207 = scmp.le.s32.totalorder 1, %s21
      %p208 = scmp.lt.s32.totalorder %s21, 3
      %p209 = pnand %p207, %p208
      %p210 = pneg %p209
      // Predicated region
      $region9: #{tpu_custom_call.1} parent=5 // pred_check
        _
      $region10: #{tpu_custom_call.1} parent=5 // pred_check_branch
        %212 = sbr.rel (%p209) target = $region12
      $region11: #{tpu_custom_call.1} parent=5 // pred_region
        %s213 = ssub.s32 %s21, 1
        // Predicated region
        $region13: #{tpu_custom_call.1} parent=11 // pred_check
          %p214 = pneg %p68
        $region14: #{tpu_custom_call.1} parent=11 // pred_check_branch
          %216 = sbr.rel (%p214) target = $region16
        $region15: #{tpu_custom_call.1} parent=11 // pred_region
          %218 = vsyncadd [#allocation6], 0
          %s220 = sshll.u32 %s1, 4
          %s221 = int_to_ptr.hbm [resolvable:$true] %s220
          %s222 = sshll.u32 [#allocation5], 4
          %s223 = int_to_ptr.vmem [resolvable:$true] %s222
          %225 = dma.hbm_to_vmem [thread:$0]  %s221, 16, %s223, [#allocation6]
        $region16: #{tpu_custom_call.1} parent=11 // pred_fallthru
          _
        // Predicated region
        $region17: #{tpu_custom_call.1} parent=11 // pred_check
          %p226 = pneg %p89
        $region18: #{tpu_custom_call.1} parent=11 // pred_check_branch
          %228 = sbr.rel (%p226) target = $region20
        $region19: #{tpu_custom_call.1} parent=11 // pred_region
          _
        $region20: #{tpu_custom_call.1} parent=11 // pred_fallthru
          _
        // Predicated region
        $region21: #{tpu_custom_call.1} parent=11 // pred_check
          %p229 = pneg %p110
        $region22: #{tpu_custom_call.1} parent=11 // pred_check_branch
          %231 = sbr.rel (%p229) target = $region24
        $region23: #{tpu_custom_call.1} parent=11 // pred_region
          %233 = vsyncadd [#allocation6], 0
          %s234 = sshll.u32 %s3, 4
          %s235 = int_to_ptr.hbm [resolvable:$true] %s234
          %s236 = sshll.u32 [#allocation7], 4
          %s237 = int_to_ptr.vmem [resolvable:$true] %s236
          %242 = dma.hbm_to_vmem [thread:$0]  %s235, 256, %s237, [#allocation6], 64, 64, 4
        $region24: #{tpu_custom_call.1} parent=11 // pred_fallthru
          _
        // Predicated region
        $region25: #{tpu_custom_call.1} parent=11 // pred_check
          %p243 = pneg %p131
        $region26: #{tpu_custom_call.1} parent=11 // pred_check_branch
          %245 = sbr.rel (%p243) target = $region28
        $region27: #{tpu_custom_call.1} parent=11 // pred_region
          _
        $region28: #{tpu_custom_call.1} parent=11 // pred_fallthru
          _
        // Predicated region
        $region29: #{tpu_custom_call.1} parent=11 // pred_check
          %p246 = pneg %p152
        $region30: #{tpu_custom_call.1} parent=11 // pred_check_branch
          %248 = sbr.rel (%p246) target = $region32
        $region31: #{tpu_custom_call.1} parent=11 // pred_region
          %250 = vsyncadd [#allocation9], 0
          %s251 = sshll.u32 %s5, 4
          %s252 = int_to_ptr.hbm [resolvable:$true] %s251
          %s253 = sshll.u32 [#allocation8], 4
          %s254 = int_to_ptr.vmem [resolvable:$true] %s253
          %259 = dma.hbm_to_vmem [thread:$0]  %s252, 256, %s254, [#allocation9], 64, 64, 4
        $region32: #{tpu_custom_call.1} parent=11 // pred_fallthru
          _
        // Predicated region
        $region33: #{tpu_custom_call.1} parent=11 // pred_check
          %p260 = pneg %p173
        $region34: #{tpu_custom_call.1} parent=11 // pred_check_branch
          %262 = sbr.rel (%p260) target = $region36
        $region35: #{tpu_custom_call.1} parent=11 // pred_region
          _
        $region36: #{tpu_custom_call.1} parent=11 // pred_fallthru
          _
      $region12: #{tpu_custom_call.1} parent=5 // pred_fallthru
        _
      %p263 = scmp.lt.s32.totalorder %s21, 2
      // Predicated region
      $region37: #{tpu_custom_call.1} parent=5 // pred_check
        %p264 = pneg %p263
      $region38: #{tpu_custom_call.1} parent=5 // pred_check_branch
        %266 = sbr.rel (%p264) target = $region40
      $region39: #{tpu_custom_call.1} parent=5 // pred_region
        // Predicated region
        $region41: #{tpu_custom_call.1} parent=39 // pred_check
          %p267 = pneg %p41
        $region42: #{tpu_custom_call.1} parent=39 // pred_check_branch
          %269 = sbr.rel (%p267) target = $region44
        $region43: #{tpu_custom_call.1} parent=39 // pred_region
          %s270 = sand.u32 %s31, 1
          %s271 = scalar_lea.sflag [#allocation3], %s270
          %s272 = sand.u32 %s31, 1
          %s273 = smul.addr %s272, 8
          %s274 = scalar_lea.vmem [#allocation2], %s273
          %276 = vsyncadd %s271, 0
          %s277 = smul.addr %s21, 8
          %s278 = scalar_lea.hbm %s0, %s277
          %s280 = sshll.u32 %s278, 4
          %s281 = int_to_ptr.hbm [resolvable:$true] %s280
          %s282 = sshll.u32 %s274, 4
          %s283 = int_to_ptr.vmem [resolvable:$true] %s282
          %285 = dma.hbm_to_vmem [thread:$0]  %s281, 128, %s283, %s271
        $region44: #{tpu_custom_call.1} parent=39 // pred_fallthru
          _
      $region40: #{tpu_custom_call.1} parent=5 // pred_fallthru
        _
      %p286 = scmp.le.s32.totalorder 1, %s21
      %p287 = scmp.lt.s32.totalorder %s21, 3
      %p288 = pnand %p286, %p287
      %p289 = pneg %p288
      // Predicated region
      $region45: #{tpu_custom_call.1} parent=5 // pred_check
        _
      $region46: #{tpu_custom_call.1} parent=5 // pred_check_branch
        %291 = sbr.rel (%p288) target = $region48
      $region47: #{tpu_custom_call.1} parent=5 // pred_region
        %s292 = ssub.s32 %s21, 1
        %s293 = sand.u32 %s34, 1
        %s294 = scalar_lea.sflag [#allocation3], %s293
        %s295 = sand.u32 %s34, 1
        %s296 = smul.addr %s295, 8
        %s297 = scalar_lea.vmem [#allocation2], %s296
        // Predicated region
        $region49: #{tpu_custom_call.1} parent=47 // pred_check
          %p298 = pneg %p47
        $region50: #{tpu_custom_call.1} parent=47 // pred_check_branch
          %300 = sbr.rel (%p298) target = $region52
        $region51: #{tpu_custom_call.1} parent=47 // pred_region
          %302 = dma.done %s294, 128
        $region52: #{tpu_custom_call.1} parent=47 // pred_fallthru
          _
        // Predicated region
        $region53: #{tpu_custom_call.1} parent=47 // pred_check
          %p303 = pneg %p68
        $region54: #{tpu_custom_call.1} parent=47 // pred_check_branch
          %305 = sbr.rel (%p303) target = $region56
        $region55: #{tpu_custom_call.1} parent=47 // pred_region
          %307 = dma.done [#allocation6], 16
        $region56: #{tpu_custom_call.1} parent=47 // pred_fallthru
          _
        // Predicated region
        $region57: #{tpu_custom_call.1} parent=47 // pred_check
          %p308 = pneg %p110
        $region58: #{tpu_custom_call.1} parent=47 // pred_check_branch
          %310 = sbr.rel (%p308) target = $region60
        $region59: #{tpu_custom_call.1} parent=47 // pred_region
          %312 = dma.done [#allocation6], 256
        $region60: #{tpu_custom_call.1} parent=47 // pred_fallthru
          _
        // Predicated region
        $region61: #{tpu_custom_call.1} parent=47 // pred_check
          %p313 = pneg %p152
        $region62: #{tpu_custom_call.1} parent=47 // pred_check_branch
          %315 = sbr.rel (%p313) target = $region64
        $region63: #{tpu_custom_call.1} parent=47 // pred_region
          %317 = dma.done [#allocation9], 256
        $region64: #{tpu_custom_call.1} parent=47 // pred_fallthru
          _
        %s318 = sand.u32 %s34, 1
        %s319 = scalar_lea.sflag [#allocation3], %s318
        %s320 = sand.u32 %s34, 1
        %s321 = smul.addr %s320, 8
        %s322 = scalar_lea.vmem [#allocation2], %s321
        %p323 = pneg %p47
        %p324 = pneg %p44
        %p325 = pneg %p68
        %p326 = pneg %p65
        %p327 = pneg %p89
        %p328 = pneg %p86
        %p329 = pneg %p110
        %p330 = pneg %p107
        %p331 = pneg %p131
        %p332 = pneg %p128
        %p333 = pneg %p152
        %p334 = pneg %p149
        %p335 = pneg %p173
        %p336 = pneg %p170
        %p337 = pneg %p199
        %p338 = pneg %p196
        %s339 = sand.u32 %s186, 1
        %s340 = scalar_lea.sflag [#allocation4], %s339
        %s341 = sand.u32 %s186, 1
        %s342 = smul.addr %s341, 8
        %s343 = scalar_lea.vmem [#allocation10], %s342
        %v345 = vld [vmem:[%s297] sm:$0xff]
        %v346 = vld [vmem:[#allocation5] sm:$0x1]
        %v347 = vld [vmem:[%s2] sm:$0x1]
        %vm348 = vcmask 261120
        %v349 = vsel %vm348, %v345, 0.0
        %350 = vadd.xlane.f32.xlu0 %v349
        %v351 = vpop.xlane.xlu0 %350
        %v352 = vrcp.pop 32.0
        %v353 = vmul.f32 32.0, %v352
        %v354 = vsub.f32 1.0, %v353
        %v355 = vmul.f32 %v352, %v354
        %v356 = vadd.f32 %v352, %v355
        %vm357 = vweird.f32 %v352
        %v358 = vsel %vm357, %v352, %v356
        %v359 = vmul.f32 %v351, %v358
        %v360 = vsub.f32 %v345, %v359
        %v361 = vmul.f32 %v360, %v360
        %v362 = vsel %vm348, %v361, 0.0
        %363 = vadd.xlane.f32.xlu0 %v362
        %v364 = vpop.xlane.xlu0 %363
        %v365 = vmul.f32 %v364, 0.032258064
        %v366 = vrsqrt.pop %v365
        %v367 = vmul.f32 %v366, %v365
        %v368 = vmul.f32 %v367, %v366
        %v369 = vmul.f32 0.5, %v368
        %v370 = vsub.f32 1.5, %v369
        %v371 = vmul.f32 %v366, %v370
        %v372 = vmul.f32 %v365, %v371
        %vm373 = vcmp.eq.f32.partialorder %v365, inf
        %v374 = vsel %vm373, %v365, %v372
        %vm375 = vcmp.eq.f32.partialorder %v365, 0.0
        %v376 = vand.u32 %v365, 2147483648
        %v377 = vsel %vm375, %v376, %v374
        %v379 = vperm.slane %v346, 0
        %v381 = vmul.f32 %v379, %v360
        %v382 = vadd.f32 %v377, 1e-06
        %v383 = vrcp.pop %v382
        %v384 = vmul.f32 %v382, %v383
        %v385 = vsub.f32 1.0, %v384
        %v386 = vmul.f32 %v383, %v385
        %v387 = vadd.f32 %v383, %v386
        %vm388 = vweird.f32 %v382
        %vm389 = vweird.f32 %v383
        %vm390 = vmor %vm388, %vm389
        %v391 = vsel %vm390, %v383, %v387
        %v392 = vand.u32 2147483647, %v382
        %vm393 = vcmp.eq.f32.partialorder %v392, 8.507059e+37
        %v394 = vand.u32 %v382, 2147483648
        %v395 = vor.u32 1.1754944e-38, %v394
        %v396 = vsel %vm393, %v395, %v391
        %v397 = vmul.f32 %v381, %v396
        %v399 = vperm.slane %v347, 0
        %v401 = vadd.f32 %v397, %v399
        %v402 = vpack.c.bf16 %v401, %v401
        %v403 = vld [vmem:[#allocation7] sm:$0xf]
        %v404 = vld [vmem:[#allocation7 + $0x4] sm:$0xf]
        %v405 = vld [vmem:[#allocation7 + $0x8] sm:$0xf]
        %v406 = vld [vmem:[#allocation7 + $0xc] sm:$0xf]
        %v407 = vld [vmem:[%s4] sm:$0x1]
        %v409 = vperm.slane %v407, 0
        %v415 = vunpack.c.l.b16 %v403
        %v416 = vunpack.c.l.b16 %v404
        %v417 = vunpack.c.l.b16 %v405
        %v418 = vunpack.c.l.b16 %v406
        %v419 = vpack.c.b16 %v416, %v415
        %v420 = vpack.c.b16 %v418, %v417
        %v424 = vsel %vm348, %v402, 0
        %426 = vmatpush.bf16.msra.mxu0 0
        %427 = vmatpush.bf16.msra.mxu0 0
        %428 = vmatpush.bf16.msra.mxu0 0
        %429 = vmatpush.bf16.msra.mxu0 0
        %430 = vmatpush.bf16.msra.mxu0 0
        %431 = vmatpush.bf16.msra.mxu0 0
        %432 = vmatpush.bf16.msra.mxu0 %v420
        %433 = vmatpush.bf16.msra.mxu0 %v419
        %434 = vmatmul.bf16.gmra.mxu0 %v424
        %v435 = vpop.f32.mrf.mxu0
        %v436 = vadd.f32 %v409, %v435
        %v437 = vpop.f32.mrf.mxu0
        %438 = vdwg.mxu0
        %v439 = vpack.c.bf16 %v436, %v436
        %v440 = vld [vmem:[%s6] sm:$0x1]
        %v442 = vperm.slane %v440, 0
        %v444 = vadd.f32 %v345, %v442
        %v446 = vunpack.c.l.b16 %v439
        %v447 = vpack.c.b16 %v446, %v446
        %448 = vrot.lane.b32.xlu0 %v447, 96
        %v449 = vpop.permute.xlu0 %448
        %vm450 = vcmask 64512
        %v452 = vsel %vm450, %v439, 0
        %v455 = vsel %vm450, %v449, 0
        %457 = vmatpush.bf16.xpose.msra.mxu0 0
        %458 = vmatpush.bf16.xpose.msra.mxu0 0
        %459 = vmatpush.bf16.xpose.msra.mxu0 0
        %460 = vmatpush.bf16.xpose.msra.mxu0 0
        %461 = vmatpush.bf16.xpose.msra.mxu0 0
        %462 = vmatpush.bf16.xpose.msra.mxu0 0
        %463 = vmatpush.bf16.xpose.msra.mxu0 0
        %464 = vmatpush.bf16.xpose.msra.mxu0 %v455
        %465 = vmatmul.bf16.gmra.mxu0 %v452
        %v466 = vpop.f32.mrf.mxu0
        %v467 = vadd.f32 0.0, %v466
        %v468 = vpop.f32.mrf.mxu0
        %469 = vdwg.mxu0
        %v470 = vmul.f32 %v467, 0.35355338
        %v471 = vsel %vm450, %v470, -inf
        %472 = vmax.xlane.f32.xlu0 %v471
        %v473 = vpop.xlane.xlu0 %472
        %v474 = vsub.f32 %v470, %v473
        %v475 = vmul.f32 %v474, 1.442695
        %v476 = vpow.pop %v475
        %v477 = vsel %vm450, %v476, 0.0
        %478 = vadd.xlane.f32.xlu0 %v477
        %v479 = vpop.xlane.xlu0 %478
        %v480 = vrcp.pop %v479
        %v481 = vmul.f32 %v479, %v480
        %v482 = vsub.f32 1.0, %v481
        %v483 = vmul.f32 %v480, %v482
        %v484 = vadd.f32 %v480, %v483
        %vm485 = vweird.f32 %v479
        %vm486 = vweird.f32 %v480
        %vm487 = vmor %vm485, %vm486
        %v488 = vsel %vm487, %v480, %v484
        %v489 = vand.u32 2147483647, %v479
        %vm490 = vcmp.eq.f32.partialorder %v489, 8.507059e+37
        %v491 = vand.u32 %v479, 2147483648
        %v492 = vor.u32 1.1754944e-38, %v491
        %v493 = vsel %vm490, %v492, %v488
        %v494 = vmul.f32 %v476, %v493
        %v495 = vpack.c.bf16 %v494, %v494
        %496 = vrot.lane.b32.xlu0 %v447, 64
        %v497 = vpop.permute.xlu0 %496
        %v499 = vsel %vm450, %v495, 0
        %vm501 = vcmask 1043456
        %v503 = vsel %vm501, %v497, 0
        %505 = vmatpush.bf16.msra.mxu0 0
        %506 = vmatpush.bf16.msra.mxu0 0
        %507 = vmatpush.bf16.msra.mxu0 0
        %508 = vmatpush.bf16.msra.mxu0 0
        %509 = vmatpush.bf16.msra.mxu0 0
        %510 = vmatpush.bf16.msra.mxu0 0
        %511 = vmatpush.bf16.msra.mxu0 0
        %512 = vmatpush.bf16.msra.mxu0 %v503
        %513 = vmatmul.bf16.gmra.mxu0 %v499
        %v514 = vpop.f32.mrf.mxu0
        %v515 = vadd.f32 0.0, %v514
        %v516 = vpop.f32.mrf.mxu0
        %517 = vdwg.mxu0
        %v518 = vpack.c.bf16 %v515, %v515
        %v519 = vld [vmem:[#allocation8] sm:$0xf]
        %v521 = vsel %vm450, %v518, 0
        %v524 = vsel %vm501, %v519, 0
        %526 = vmatpush.bf16.msra.mxu0 0
        %527 = vmatpush.bf16.msra.mxu0 0
        %528 = vmatpush.bf16.msra.mxu0 0
        %529 = vmatpush.bf16.msra.mxu0 0
        %530 = vmatpush.bf16.msra.mxu0 0
        %531 = vmatpush.bf16.msra.mxu0 0
        %532 = vmatpush.bf16.msra.mxu0 0
        %533 = vmatpush.bf16.msra.mxu0 %v524
        %534 = vmatmul.bf16.gmra.mxu0 %v521
        %v535 = vpop.f32.mrf.mxu0
        %v536 = vadd.f32 0.0, %v535
        %v537 = vpop.f32.mrf.mxu0
        %538 = vdwg.mxu0
        %v539 = vadd.f32 %v444, %v536
        %540 = vrot.lane.b32.xlu0 %v447, 120
        %v541 = vpop.permute.xlu0 %540
        %542 = vrot.lane.b32.xlu0 %v447, 88
        %v543 = vpop.permute.xlu0 %542
        %v545 = vsel %vm450, %v541, 0
        %v548 = vsel %vm450, %v543, 0
        %550 = vmatpush.bf16.xpose.msra.mxu0 0
        %551 = vmatpush.bf16.xpose.msra.mxu0 0
        %552 = vmatpush.bf16.xpose.msra.mxu0 0
        %553 = vmatpush.bf16.xpose.msra.mxu0 0
        %554 = vmatpush.bf16.xpose.msra.mxu0 0
        %555 = vmatpush.bf16.xpose.msra.mxu0 0
        %556 = vmatpush.bf16.xpose.msra.mxu0 0
        %557 = vmatpush.bf16.xpose.msra.mxu0 %v548
        %558 = vmatmul.bf16.gmra.mxu0 %v545
        %v559 = vpop.f32.mrf.mxu0
        %v560 = vadd.f32 0.0, %v559
        %v561 = vpop.f32.mrf.mxu0
        %562 = vdwg.mxu0
        %v563 = vmul.f32 %v560, 0.35355338
        %v564 = vsel %vm450, %v563, -inf
        %565 = vmax.xlane.f32.xlu0 %v564
        %v566 = vpop.xlane.xlu0 %565
        %v567 = vsub.f32 %v563, %v566
        %v568 = vmul.f32 %v567, 1.442695
        %v569 = vpow.pop %v568
        %v570 = vsel %vm450, %v569, 0.0
        %571 = vadd.xlane.f32.xlu0 %v570
        %v572 = vpop.xlane.xlu0 %571
        %v573 = vrcp.pop %v572
        %v574 = vmul.f32 %v572, %v573
        %v575 = vsub.f32 1.0, %v574
        %v576 = vmul.f32 %v573, %v575
        %v577 = vadd.f32 %v573, %v576
        %vm578 = vweird.f32 %v572
        %vm579 = vweird.f32 %v573
        %vm580 = vmor %vm578, %vm579
        %v581 = vsel %vm580, %v573, %v577
        %v582 = vand.u32 2147483647, %v572
        %vm583 = vcmp.eq.f32.partialorder %v582, 8.507059e+37
        %v584 = vand.u32 %v572, 2147483648
        %v585 = vor.u32 1.1754944e-38, %v584
        %v586 = vsel %vm583, %v585, %v581
        %v587 = vmul.f32 %v569, %v586
        %v588 = vpack.c.bf16 %v587, %v587
        %589 = vrot.lane.b32.xlu0 %v447, 56
        %v590 = vpop.permute.xlu0 %589
        %v592 = vsel %vm450, %v588, 0
        %v595 = vsel %vm501, %v590, 0
        %597 = vmatpush.bf16.msra.mxu0 0
        %598 = vmatpush.bf16.msra.mxu0 0
        %599 = vmatpush.bf16.msra.mxu0 0
        %600 = vmatpush.bf16.msra.mxu0 0
        %601 = vmatpush.bf16.msra.mxu0 0
        %602 = vmatpush.bf16.msra.mxu0 0
        %603 = vmatpush.bf16.msra.mxu0 0
        %604 = vmatpush.bf16.msra.mxu0 %v595
        %605 = vmatmul.bf16.gmra.mxu0 %v592
        %v606 = vpop.f32.mrf.mxu0
        %v607 = vadd.f32 0.0, %v606
        %v608 = vpop.f32.mrf.mxu0
        %609 = vdwg.mxu0
        %v610 = vpack.c.bf16 %v607, %v607
        %s611 = scalar_lea.vmem [#allocation8], 4
        %v612 = vld [vmem:[%s611] sm:$0xf]
        %v614 = vsel %vm450, %v610, 0
        %v617 = vsel %vm501, %v612, 0
        %619 = vmatpush.bf16.msra.mxu0 0
        %620 = vmatpush.bf16.msra.mxu0 0
        %621 = vmatpush.bf16.msra.mxu0 0
        %622 = vmatpush.bf16.msra.mxu0 0
        %623 = vmatpush.bf16.msra.mxu0 0
        %624 = vmatpush.bf16.msra.mxu0 0
        %625 = vmatpush.bf16.msra.mxu0 0
        %626 = vmatpush.bf16.msra.mxu0 %v617
        %627 = vmatmul.bf16.gmra.mxu0 %v614
        %v628 = vpop.f32.mrf.mxu0
        %v629 = vadd.f32 0.0, %v628
        %v630 = vpop.f32.mrf.mxu0
        %631 = vdwg.mxu0
        %v632 = vadd.f32 %v539, %v629
        %633 = vrot.lane.b32.xlu0 %v447, 112
        %v634 = vpop.permute.xlu0 %633
        %635 = vrot.lane.b32.xlu0 %v447, 80
        %v636 = vpop.permute.xlu0 %635
        %v638 = vsel %vm450, %v634, 0
        %v641 = vsel %vm450, %v636, 0
        %643 = vmatpush.bf16.xpose.msra.mxu0 0
        %644 = vmatpush.bf16.xpose.msra.mxu0 0
        %645 = vmatpush.bf16.xpose.msra.mxu0 0
        %646 = vmatpush.bf16.xpose.msra.mxu0 0
        %647 = vmatpush.bf16.xpose.msra.mxu0 0
        %648 = vmatpush.bf16.xpose.msra.mxu0 0
        %649 = vmatpush.bf16.xpose.msra.mxu0 0
        %650 = vmatpush.bf16.xpose.msra.mxu0 %v641
        %651 = vmatmul.bf16.gmra.mxu0 %v638
        %v652 = vpop.f32.mrf.mxu0
        %v653 = vadd.f32 0.0, %v652
        %v654 = vpop.f32.mrf.mxu0
        %655 = vdwg.mxu0
        %v656 = vmul.f32 %v653, 0.35355338
        %v657 = vsel %vm450, %v656, -inf
        %658 = vmax.xlane.f32.xlu0 %v657
        %v659 = vpop.xlane.xlu0 %658
        %v660 = vsub.f32 %v656, %v659
        %v661 = vmul.f32 %v660, 1.442695
        %v662 = vpow.pop %v661
        %v663 = vsel %vm450, %v662, 0.0
        %664 = vadd.xlane.f32.xlu0 %v663
        %v665 = vpop.xlane.xlu0 %664
        %v666 = vrcp.pop %v665
        %v667 = vmul.f32 %v665, %v666
        %v668 = vsub.f32 1.0, %v667
        %v669 = vmul.f32 %v666, %v668
        %v670 = vadd.f32 %v666, %v669
        %vm671 = vweird.f32 %v665
        %vm672 = vweird.f32 %v666
        %vm673 = vmor %vm671, %vm672
        %v674 = vsel %vm673, %v666, %v670
        %v675 = vand.u32 2147483647, %v665
        %vm676 = vcmp.eq.f32.partialorder %v675, 8.507059e+37
        %v677 = vand.u32 %v665, 2147483648
        %v678 = vor.u32 1.1754944e-38, %v677
        %v679 = vsel %vm676, %v678, %v674
        %v680 = vmul.f32 %v662, %v679
        %v681 = vpack.c.bf16 %v680, %v680
        %682 = vrot.lane.b32.xlu0 %v447, 48
        %v683 = vpop.permute.xlu0 %682
        %v685 = vsel %vm450, %v681, 0
        %v688 = vsel %vm501, %v683, 0
        %690 = vmatpush.bf16.msra.mxu0 0
        %691 = vmatpush.bf16.msra.mxu0 0
        %692 = vmatpush.bf16.msra.mxu0 0
        %693 = vmatpush.bf16.msra.mxu0 0
        %694 = vmatpush.bf16.msra.mxu0 0
        %695 = vmatpush.bf16.msra.mxu0 0
        %696 = vmatpush.bf16.msra.mxu0 0
        %697 = vmatpush.bf16.msra.mxu0 %v688
        %698 = vmatmul.bf16.gmra.mxu0 %v685
        %v699 = vpop.f32.mrf.mxu0
        %v700 = vadd.f32 0.0, %v699
        %v701 = vpop.f32.mrf.mxu0
        %702 = vdwg.mxu0
        %v703 = vpack.c.bf16 %v700, %v700
        %s704 = scalar_lea.vmem [#allocation8], 8
        %v705 = vld [vmem:[%s704] sm:$0xf]
        %v707 = vsel %vm450, %v703, 0
        %v710 = vsel %vm501, %v705, 0
        %712 = vmatpush.bf16.msra.mxu0 0
        %713 = vmatpush.bf16.msra.mxu0 0
        %714 = vmatpush.bf16.msra.mxu0 0
        %715 = vmatpush.bf16.msra.mxu0 0
        %716 = vmatpush.bf16.msra.mxu0 0
        %717 = vmatpush.bf16.msra.mxu0 0
        %718 = vmatpush.bf16.msra.mxu0 0
        %719 = vmatpush.bf16.msra.mxu0 %v710
        %720 = vmatmul.bf16.gmra.mxu0 %v707
        %v721 = vpop.f32.mrf.mxu0
        %v722 = vadd.f32 0.0, %v721
        %v723 = vpop.f32.mrf.mxu0
        %724 = vdwg.mxu0
        %v725 = vadd.f32 %v632, %v722
        %726 = vrot.lane.b32.xlu0 %v447, 104
        %v727 = vpop.permute.xlu0 %726
        %728 = vrot.lane.b32.xlu0 %v447, 72
        %v729 = vpop.permute.xlu0 %728
        %v731 = vsel %vm450, %v727, 0
        %v734 = vsel %vm450, %v729, 0
        %736 = vmatpush.bf16.xpose.msra.mxu0 0
        %737 = vmatpush.bf16.xpose.msra.mxu0 0
        %738 = vmatpush.bf16.xpose.msra.mxu0 0
        %739 = vmatpush.bf16.xpose.msra.mxu0 0
        %740 = vmatpush.bf16.xpose.msra.mxu0 0
        %741 = vmatpush.bf16.xpose.msra.mxu0 0
        %742 = vmatpush.bf16.xpose.msra.mxu0 0
        %743 = vmatpush.bf16.xpose.msra.mxu0 %v734
        %744 = vmatmul.bf16.gmra.mxu0 %v731
        %v745 = vpop.f32.mrf.mxu0
        %v746 = vadd.f32 0.0, %v745
        %v747 = vpop.f32.mrf.mxu0
        %748 = vdwg.mxu0
        %v749 = vmul.f32 %v746, 0.35355338
        %v750 = vsel %vm450, %v749, -inf
        %751 = vmax.xlane.f32.xlu0 %v750
        %v752 = vpop.xlane.xlu0 %751
        %v753 = vsub.f32 %v749, %v752
        %v754 = vmul.f32 %v753, 1.442695
        %v755 = vpow.pop %v754
        %v756 = vsel %vm450, %v755, 0.0
        %757 = vadd.xlane.f32.xlu0 %v756
        %v758 = vpop.xlane.xlu0 %757
        %v759 = vrcp.pop %v758
        %v760 = vmul.f32 %v758, %v759
        %v761 = vsub.f32 1.0, %v760
        %v762 = vmul.f32 %v759, %v761
        %v763 = vadd.f32 %v759, %v762
        %vm764 = vweird.f32 %v758
        %vm765 = vweird.f32 %v759
        %vm766 = vmor %vm764, %vm765
        %v767 = vsel %vm766, %v759, %v763
        %v768 = vand.u32 2147483647, %v758
        %vm769 = vcmp.eq.f32.partialorder %v768, 8.507059e+37
        %v770 = vand.u32 %v758, 2147483648
        %v771 = vor.u32 1.1754944e-38, %v770
        %v772 = vsel %vm769, %v771, %v767
        %v773 = vmul.f32 %v755, %v772
        %v774 = vpack.c.bf16 %v773, %v773
        %775 = vrot.lane.b32.xlu0 %v447, 40
        %v776 = vpop.permute.xlu0 %775
        %v778 = vsel %vm450, %v774, 0
        %v781 = vsel %vm501, %v776, 0
        %783 = vmatpush.bf16.msra.mxu0 0
        %784 = vmatpush.bf16.msra.mxu0 0
        %785 = vmatpush.bf16.msra.mxu0 0
        %786 = vmatpush.bf16.msra.mxu0 0
        %787 = vmatpush.bf16.msra.mxu0 0
        %788 = vmatpush.bf16.msra.mxu0 0
        %789 = vmatpush.bf16.msra.mxu0 0
        %790 = vmatpush.bf16.msra.mxu0 %v781
        %791 = vmatmul.bf16.gmra.mxu0 %v778
        %v792 = vpop.f32.mrf.mxu0
        %v793 = vadd.f32 0.0, %v792
        %v794 = vpop.f32.mrf.mxu0
        %795 = vdwg.mxu0
        %v796 = vpack.c.bf16 %v793, %v793
        %s797 = scalar_lea.vmem [#allocation8], 12
        %v798 = vld [vmem:[%s797] sm:$0xf]
        %v800 = vsel %vm450, %v796, 0
        %v803 = vsel %vm501, %v798, 0
        %805 = vmatpush.bf16.msra.mxu0 0
        %806 = vmatpush.bf16.msra.mxu0 0
        %807 = vmatpush.bf16.msra.mxu0 0
        %808 = vmatpush.bf16.msra.mxu0 0
        %809 = vmatpush.bf16.msra.mxu0 0
        %810 = vmatpush.bf16.msra.mxu0 0
        %811 = vmatpush.bf16.msra.mxu0 0
        %812 = vmatpush.bf16.msra.mxu0 %v803
        %813 = vmatmul.bf16.gmra.mxu0 %v800
        %v814 = vpop.f32.mrf.mxu0
        %v815 = vadd.f32 0.0, %v814
        %v816 = vpop.f32.mrf.mxu0
        %817 = vdwg.mxu0
        %v818 = vadd.f32 %v725, %v815
        %819 = vst.msk [vmem:[%s343] sm:$0xff] %vm348, %v818
        %s820 = sand.u32 %s186, 1
        %s821 = scalar_lea.sflag [#allocation4], %s820
        %s822 = sand.u32 %s186, 1
        %s823 = smul.addr %s822, 8
        %s824 = scalar_lea.vmem [#allocation10], %s823
        // Predicated region
        $region65: #{tpu_custom_call.1} parent=47 // pred_check
          %p825 = pneg %p196
        $region66: #{tpu_custom_call.1} parent=47 // pred_check_branch
          %827 = sbr.rel (%p825) target = $region68
        $region67: #{tpu_custom_call.1} parent=47 // pred_region
          %829 = vsyncadd %s821, 0
          %s830 = smul.addr %s26, 8
          %s831 = scalar_lea.hbm %s7, %s830
          %s833 = sshll.u32 %s824, 4
          %s834 = int_to_ptr.vmem [resolvable:$true] %s833
          %s835 = sshll.u32 %s831, 4
          %s836 = int_to_ptr.hbm [resolvable:$true] %s835
          %838 = dma.vmem_to_hbm [thread:$0]  %s834, 128, %s836, %s821
        $region68: #{tpu_custom_call.1} parent=47 // pred_fallthru
          _
      $region48: #{tpu_custom_call.1} parent=5 // pred_fallthru
        _
      %p839 = scmp.le.s32.totalorder 2, %s21
      // Predicated region
      $region69: #{tpu_custom_call.1} parent=5 // pred_check
        %p840 = pneg %p839
      $region70: #{tpu_custom_call.1} parent=5 // pred_check_branch
        %842 = sbr.rel (%p840) target = $region72
      $region71: #{tpu_custom_call.1} parent=5 // pred_region
        %s843 = ssub.s32 %s21, 2
        // Predicated region
        $region73: #{tpu_custom_call.1} parent=71 // pred_check
          %p844 = pneg %p202
        $region74: #{tpu_custom_call.1} parent=71 // pred_check_branch
          %846 = sbr.rel (%p844) target = $region76
        $region75: #{tpu_custom_call.1} parent=71 // pred_region
          %s847 = sand.u32 %s187, 1
          %s848 = scalar_lea.sflag [#allocation4], %s847
          %s849 = sand.u32 %s187, 1
          %s850 = smul.addr %s849, 8
          %s851 = scalar_lea.vmem [#allocation10], %s850
          %853 = dma.done %s848, 128
        $region76: #{tpu_custom_call.1} parent=71 // pred_fallthru
          _
      $region72: #{tpu_custom_call.1} parent=5 // pred_fallthru
        _
    $region6: #{tpu_custom_call.1} parent=1 // loop_footer
      %s25 = sadd.s32 1, %s21
    $region7: #{tpu_custom_call.1} parent=1 // loop_footer_branch
      %20 = sbr.rel target = $region3
    $region8: #{tpu_custom_call.1} parent=1 // loop_exit
      _
    %854 = vsyncpa [#allocation3], 1
    %s855 = scalar_lea.sflag [#allocation3], 1
    %856 = vsyncpa %s855, 1
    %857 = vsyncpa [#allocation6], 1
    %858 = vsyncpa [#allocation9], 1
    %859 = vsyncpa [#allocation4], 1
    %s860 = scalar_lea.sflag [#allocation4], 1
    %861 = vsyncpa %s860, 1

// kernel: tpu_custom_call.1
$region0: #{tpu_custom_call.1}
  #allocation0 [shape = 'u32[]', space=smem, size = 0x4, offset = 0x4, fixed_abs, tag = 'smem constant byte address 0x4 - core index']
  #allocation1 [shape = 'u32[72,128]{1,0:T(1,128)}', space=vmem, size = 0x9000, scoped, tag = 'internal scratch']
  %s0 = inlined_call_operand.hbm [shape: f32[2,8,32], index: 0, kind: input, shape index: {}]
  %s1 = inlined_call_operand.hbm [shape: f32[1,32], index: 1, kind: input, shape index: {}]
  %s2 = inlined_call_operand.vmem [shape: f32[1,32], index: 2, kind: input, shape index: {}]
  %s3 = inlined_call_operand.hbm [shape: bf16[32,96], index: 3, kind: input, shape index: {}]
  %s4 = inlined_call_operand.vmem [shape: f32[1,96], index: 4, kind: input, shape index: {}]
  %s5 = inlined_call_operand.hbm [shape: bf16[4,8,32], index: 5, kind: input, shape index: {}]
  %s6 = inlined_call_operand.vmem [shape: f32[1,32], index: 6, kind: input, shape index: {}]
  %s7 = inlined_call_operand.hbm [shape: f32[2,8,32], index: 7, kind: output, shape index: {}]
  %s8 = sld [smem:[#allocation0]]
  $region77: #{tpu_custom_call.1} parent=0
    _
  %s10 = ssub.s32 1, %s8
  %s11 = scalar_select 0, %s10, %s8
  $region1: #{tpu_custom_call.1} parent=0
    #allocation2 [shape = 'u8[8192]{0}', space=vmem, size = 0x2000, scoped, tag = 'input window, operand 0']
    #allocation3 [shape = 's32[2]{0}', space=sflag, size = 0x8, scoped, tag = 'scoped memory for tpu_custom_call.1']
    #allocation4 [shape = 's32[2]{0}', space=sflag, size = 0x8, scoped, tag = 'scoped memory for tpu_custom_call.1']
    #allocation5 [shape = 'u8[512]{0}', space=vmem, size = 0x400, scoped, tag = 'input window, operand 1, single buffered']
    #allocation6 [shape = 's32[1]{0}', space=sflag, size = 0x4, scoped, tag = 'scoped memory for tpu_custom_call.1']
    #allocation7 [shape = 'u8[8192]{0}', space=vmem, size = 0x2000, scoped, tag = 'input window, operand 3, single buffered']
    #allocation8 [shape = 'u8[8192]{0}', space=vmem, size = 0x2000, scoped, tag = 'input window, operand 5, single buffered']
    #allocation9 [shape = 's32[1]{0}', space=sflag, size = 0x4, scoped, tag = 'scoped memory for tpu_custom_call.1']
    #allocation10 [shape = 'u8[8192]{0}', space=vmem, size = 0x2000, scoped, tag = 'output window, operand 0']
    %12 = vsyncpa [#allocation3], 0
    %s13 = scalar_lea.sflag [#allocation3], 1
    %14 = vsyncpa %s13, 0
    %15 = vsyncpa [#allocation6], 0
    %16 = vsyncpa [#allocation9], 0
    %17 = vsyncpa [#allocation4], 0
    %s18 = scalar_lea.sflag [#allocation4], 1
    %19 = vsyncpa %s18, 0
    loop: start=0, step=1, limit=4
    $region2: #{tpu_custom_call.1} parent=1 // loop_pre_header
      _
    $region3: #{tpu_custom_call.1} parent=1 // loop_header
      %s21 = sphi 0, %s25
      %p22 = scmp.ge.s32.totalorder %s21, 4
      %s31 = sphi 0, %s33
      %s34 = sphi 0, %s31
      %s35 = sphi 0, %s34
      %s51 = sphi 0, %s35
      %s55 = sphi 0, %s55
      %s57 = sphi 0, %s55
      %s58 = sphi 0, %s57
      %s72 = sphi 0, %s58
      %s76 = sphi 0, %s76
      %s78 = sphi 0, %s76
      %s79 = sphi 0, %s78
      %s93 = sphi 0, %s79
      %s97 = sphi 0, %s97
      %s99 = sphi 0, %s97
      %s100 = sphi 0, %s99
      %s114 = sphi 0, %s100
      %s118 = sphi 0, %s118
      %s120 = sphi 0, %s118
      %s121 = sphi 0, %s120
      %s135 = sphi 0, %s121
      %s139 = sphi 0, %s139
      %s141 = sphi 0, %s139
      %s142 = sphi 0, %s141
      %s156 = sphi 0, %s142
      %s160 = sphi 0, %s160
      %s162 = sphi 0, %s160
      %s163 = sphi 0, %s162
      %s177 = sphi 0, %s163
      %s183 = sphi 0, %s185
      %s186 = sphi 0, %s183
      %s187 = sphi 0, %s186
      %s203 = sphi 0, %s187
    $region4: #{tpu_custom_call.1} parent=1 // loop_header_branch
      %24 = sbr.rel (%p22) target = $region8
    $region5: #{tpu_custom_call.1} parent=1 // loop_body
      %s26 = ssub.s32 %s21, 1
      %s27 = ssub.s32 %s21, 2
      %s28 = sadd.s32 %s21, 1
      %s29 = ssub.s32 %s21, %s28
      %p30 = scmp.eq.s32.totalorder %s29, 0
      %s32 = sadd.s32 %s31, 1
      %s33 = scalar_select %p30, %s31, %s32
      %p36 = pneg %p30
      %p37 = scmp.eq.s32.totalorder %s21, 1
      %p38 = por %p36, %p37
      %p39 = scmp.ne.s32.totalorder %s31, %s34
      %p40 = scmp.eq.s32.totalorder %s21, 0
      %p41 = por %p39, %p40
      %p42 = scmp.ne.s32.totalorder %s31, %s34
      %p43 = scmp.eq.s32.totalorder %s26, 1
      %p44 = por %p42, %p43
      %p45 = scmp.ne.s32.totalorder %s34, %s35
      %p46 = scmp.eq.s32.totalorder %s26, 0
      %p47 = por %p45, %p46
      %p48 = scmp.ne.s32.totalorder %s34, %s35
      %p49 = scmp.eq.s32.totalorder %s27, 1
      %p50 = por %p48, %p49
      %p52 = scmp.ne.s32.totalorder %s35, %s51
      %p53 = scmp.eq.s32.totalorder %s27, 0
      %p54 = por %p52, %p53
      %s56 = sadd.s32 %s55, 1
      %p59 = scmp.eq.s32.totalorder %s21, 1
      %p60 = scmp.ne.s32.totalorder %s55, %s57
      %p61 = scmp.eq.s32.totalorder %s21, 0
      %p62 = por %p60, %p61
      %p63 = scmp.ne.s32.totalorder %s55, %s57
      %p64 = scmp.eq.s32.totalorder %s26, 1
      %p65 = por %p63, %p64
      %p66 = scmp.ne.s32.totalorder %s57, %s58
      %p67 = scmp.eq.s32.totalorder %s26, 0
      %p68 = por %p66, %p67
      %p69 = scmp.ne.s32.totalorder %s57, %s58
      %p70 = scmp.eq.s32.totalorder %s27, 1
      %p71 = por %p69, %p70
      %p73 = scmp.ne.s32.totalorder %s58, %s72
      %p74 = scmp.eq.s32.totalorder %s27, 0
      %p75 = por %p73, %p74
      %s77 = sadd.s32 %s76, 1
      %p80 = scmp.eq.s32.totalorder %s21, 1
      %p81 = scmp.ne.s32.totalorder %s76, %s78
      %p82 = scmp.eq.s32.totalorder %s21, 0
      %p83 = por %p81, %p82
      %p84 = scmp.ne.s32.totalorder %s76, %s78
      %p85 = scmp.eq.s32.totalorder %s26, 1
      %p86 = por %p84, %p85
      %p87 = scmp.ne.s32.totalorder %s78, %s79
      %p88 = scmp.eq.s32.totalorder %s26, 0
      %p89 = por %p87, %p88
      %p90 = scmp.ne.s32.totalorder %s78, %s79
      %p91 = scmp.eq.s32.totalorder %s27, 1
      %p92 = por %p90, %p91
      %p94 = scmp.ne.s32.totalorder %s79, %s93
      %p95 = scmp.eq.s32.totalorder %s27, 0
      %p96 = por %p94, %p95
      %s98 = sadd.s32 %s97, 1
      %p101 = scmp.eq.s32.totalorder %s21, 1
      %p102 = scmp.ne.s32.totalorder %s97, %s99
      %p103 = scmp.eq.s32.totalorder %s21, 0
      %p104 = por %p102, %p103
      %p105 = scmp.ne.s32.totalorder %s97, %s99
      %p106 = scmp.eq.s32.totalorder %s26, 1
      %p107 = por %p105, %p106
      %p108 = scmp.ne.s32.totalorder %s99, %s100
      %p109 = scmp.eq.s32.totalorder %s26, 0
      %p110 = por %p108, %p109
      %p111 = scmp.ne.s32.totalorder %s99, %s100
      %p112 = scmp.eq.s32.totalorder %s27, 1
      %p113 = por %p111, %p112
      %p115 = scmp.ne.s32.totalorder %s100, %s114
      %p116 = scmp.eq.s32.totalorder %s27, 0
      %p117 = por %p115, %p116
      %s119 = sadd.s32 %s118, 1
      %p122 = scmp.eq.s32.totalorder %s21, 1
      %p123 = scmp.ne.s32.totalorder %s118, %s120
      %p124 = scmp.eq.s32.totalorder %s21, 0
      %p125 = por %p123, %p124
      %p126 = scmp.ne.s32.totalorder %s118, %s120
      %p127 = scmp.eq.s32.totalorder %s26, 1
      %p128 = por %p126, %p127
      %p129 = scmp.ne.s32.totalorder %s120, %s121
      %p130 = scmp.eq.s32.totalorder %s26, 0
      %p131 = por %p129, %p130
      %p132 = scmp.ne.s32.totalorder %s120, %s121
      %p133 = scmp.eq.s32.totalorder %s27, 1
      %p134 = por %p132, %p133
      %p136 = scmp.ne.s32.totalorder %s121, %s135
      %p137 = scmp.eq.s32.totalorder %s27, 0
      %p138 = por %p136, %p137
      %s140 = sadd.s32 %s139, 1
      %p143 = scmp.eq.s32.totalorder %s21, 1
      %p144 = scmp.ne.s32.totalorder %s139, %s141
      %p145 = scmp.eq.s32.totalorder %s21, 0
      %p146 = por %p144, %p145
      %p147 = scmp.ne.s32.totalorder %s139, %s141
      %p148 = scmp.eq.s32.totalorder %s26, 1
      %p149 = por %p147, %p148
      %p150 = scmp.ne.s32.totalorder %s141, %s142
      %p151 = scmp.eq.s32.totalorder %s26, 0
      %p152 = por %p150, %p151
      %p153 = scmp.ne.s32.totalorder %s141, %s142
      %p154 = scmp.eq.s32.totalorder %s27, 1
      %p155 = por %p153, %p154
      %p157 = scmp.ne.s32.totalorder %s142, %s156
      %p158 = scmp.eq.s32.totalorder %s27, 0
      %p159 = por %p157, %p158
      %s161 = sadd.s32 %s160, 1
      %p164 = scmp.eq.s32.totalorder %s21, 1
      %p165 = scmp.ne.s32.totalorder %s160, %s162
      %p166 = scmp.eq.s32.totalorder %s21, 0
      %p167 = por %p165, %p166
      %p168 = scmp.ne.s32.totalorder %s160, %s162
      %p169 = scmp.eq.s32.totalorder %s26, 1
      %p170 = por %p168, %p169
      %p171 = scmp.ne.s32.totalorder %s162, %s163
      %p172 = scmp.eq.s32.totalorder %s26, 0
      %p173 = por %p171, %p172
      %p174 = scmp.ne.s32.totalorder %s162, %s163
      %p175 = scmp.eq.s32.totalorder %s27, 1
      %p176 = por %p174, %p175
      %p178 = scmp.ne.s32.totalorder %s163, %s177
      %p179 = scmp.eq.s32.totalorder %s27, 0
      %p180 = por %p178, %p179
      %s181 = ssub.s32 %s21, %s28
      %p182 = scmp.eq.s32.totalorder %s181, 0
      %s184 = sadd.s32 %s183, 1
      %s185 = scalar_select %p182, %s183, %s184
      %p188 = pneg %p182
      %p189 = scmp.eq.s32.totalorder %s21, 1
      %p190 = por %p188, %p189
      %p191 = scmp.ne.s32.totalorder %s183, %s186
      %p192 = scmp.eq.s32.totalorder %s21, 0
      %p193 = por %p191, %p192
      %p194 = scmp.ne.s32.totalorder %s183, %s186
      %p195 = scmp.eq.s32.totalorder %s26, 1
      %p196 = por %p194, %p195
      %p197 = scmp.ne.s32.totalorder %s186, %s187
      %p198 = scmp.eq.s32.totalorder %s26, 0
      %p199 = por %p197, %p198
      %p200 = scmp.ne.s32.totalorder %s186, %s187
      %p201 = scmp.eq.s32.totalorder %s27, 1
      %p202 = por %p200, %p201
      %p204 = scmp.ne.s32.totalorder %s187, %s203
      %p205 = scmp.eq.s32.totalorder %s27, 0
      %p206 = por %p204, %p205
      %p207 = scmp.le.s32.totalorder 1, %s21
      %p208 = scmp.lt.s32.totalorder %s21, 3
      %p209 = pnand %p207, %p208
      %p210 = pneg %p209
      // Predicated region
      $region9: #{tpu_custom_call.1} parent=5 // pred_check
        _
      $region10: #{tpu_custom_call.1} parent=5 // pred_check_branch
        %212 = sbr.rel (%p209) target = $region12
      $region11: #{tpu_custom_call.1} parent=5 // pred_region
        %s213 = ssub.s32 %s21, 1
        // Predicated region
        $region13: #{tpu_custom_call.1} parent=11 // pred_check
          %p214 = pneg %p68
        $region14: #{tpu_custom_call.1} parent=11 // pred_check_branch
          %216 = sbr.rel (%p214) target = $region16
        $region15: #{tpu_custom_call.1} parent=11 // pred_region
          %218 = vsyncadd [#allocation6], 0
          %s220 = sshll.u32 %s1, 4
          %s221 = int_to_ptr.hbm [resolvable:$true] %s220
          %s222 = sshll.u32 [#allocation5], 4
          %s223 = int_to_ptr.vmem [resolvable:$true] %s222
          %225 = dma.hbm_to_vmem [thread:$0]  %s221, 16, %s223, [#allocation6]
        $region16: #{tpu_custom_call.1} parent=11 // pred_fallthru
          _
        // Predicated region
        $region17: #{tpu_custom_call.1} parent=11 // pred_check
          %p226 = pneg %p89
        $region18: #{tpu_custom_call.1} parent=11 // pred_check_branch
          %228 = sbr.rel (%p226) target = $region20
        $region19: #{tpu_custom_call.1} parent=11 // pred_region
          _
        $region20: #{tpu_custom_call.1} parent=11 // pred_fallthru
          _
        // Predicated region
        $region21: #{tpu_custom_call.1} parent=11 // pred_check
          %p229 = pneg %p110
        $region22: #{tpu_custom_call.1} parent=11 // pred_check_branch
          %231 = sbr.rel (%p229) target = $region24
        $region23: #{tpu_custom_call.1} parent=11 // pred_region
          %233 = vsyncadd [#allocation6], 0
          %s234 = sshll.u32 %s3, 4
          %s235 = int_to_ptr.hbm [resolvable:$true] %s234
          %s236 = sshll.u32 [#allocation7], 4
          %s237 = int_to_ptr.vmem [resolvable:$true] %s236
          %242 = dma.hbm_to_vmem [thread:$0]  %s235, 256, %s237, [#allocation6], 64, 64, 4
        $region24: #{tpu_custom_call.1} parent=11 // pred_fallthru
          _
        // Predicated region
        $region25: #{tpu_custom_call.1} parent=11 // pred_check
          %p243 = pneg %p131
        $region26: #{tpu_custom_call.1} parent=11 // pred_check_branch
          %245 = sbr.rel (%p243) target = $region28
        $region27: #{tpu_custom_call.1} parent=11 // pred_region
          _
        $region28: #{tpu_custom_call.1} parent=11 // pred_fallthru
          _
        // Predicated region
        $region29: #{tpu_custom_call.1} parent=11 // pred_check
          %p246 = pneg %p152
        $region30: #{tpu_custom_call.1} parent=11 // pred_check_branch
          %248 = sbr.rel (%p246) target = $region32
        $region31: #{tpu_custom_call.1} parent=11 // pred_region
          %250 = vsyncadd [#allocation9], 0
          %s251 = sshll.u32 %s5, 4
          %s252 = int_to_ptr.hbm [resolvable:$true] %s251
          %s253 = sshll.u32 [#allocation8], 4
          %s254 = int_to_ptr.vmem [resolvable:$true] %s253
          %259 = dma.hbm_to_vmem [thread:$0]  %s252, 256, %s254, [#allocation9], 64, 64, 4
        $region32: #{tpu_custom_call.1} parent=11 // pred_fallthru
          _
        // Predicated region
        $region33: #{tpu_custom_call.1} parent=11 // pred_check
          %p260 = pneg %p173
        $region34: #{tpu_custom_call.1} parent=11 // pred_check_branch
          %262 = sbr.rel (%p260) target = $region36
        $region35: #{tpu_custom_call.1} parent=11 // pred_region
          _
        $region36: #{tpu_custom_call.1} parent=11 // pred_fallthru
          _
      $region12: #{tpu_custom_call.1} parent=5 // pred_fallthru
        _
      %p263 = scmp.lt.s32.totalorder %s21, 2
      // Predicated region
      $region37: #{tpu_custom_call.1} parent=5 // pred_check
        %p264 = pneg %p263
      $region38: #{tpu_custom_call.1} parent=5 // pred_check_branch
        %266 = sbr.rel (%p264) target = $region40
      $region39: #{tpu_custom_call.1} parent=5 // pred_region
        // Predicated region
        $region41: #{tpu_custom_call.1} parent=39 // pred_check
          %p267 = pneg %p41
        $region42: #{tpu_custom_call.1} parent=39 // pred_check_branch
          %269 = sbr.rel (%p267) target = $region44
        $region43: #{tpu_custom_call.1} parent=39 // pred_region
          %s270 = sand.u32 %s31, 1
          %s271 = scalar_lea.sflag [#allocation3], %s270
          %s272 = sand.u32 %s31, 1
          %s273 = smul.addr %s272, 8
          %s274 = scalar_lea.vmem [#allocation2], %s273
          %276 = vsyncadd %s271, 0
          %s277 = smul.addr %s21, 8
          %s278 = scalar_lea.hbm %s0, %s277
          %s280 = sshll.u32 %s278, 4
          %s281 = int_to_ptr.hbm [resolvable:$true] %s280
          %s282 = sshll.u32 %s274, 4
          %s283 = int_to_ptr.vmem [resolvable:$true] %s282
          %285 = dma.hbm_to_vmem [thread:$0]  %s281, 128, %s283, %s271
        $region44: #{tpu_custom_call.1} parent=39 // pred_fallthru
          _
      $region40: #{tpu_custom_call.1} parent=5 // pred_fallthru
        _
      %p286 = scmp.le.s32.totalorder 1, %s21
      %p287 = scmp.lt.s32.totalorder %s21, 3
      %p288 = pnand %p286, %p287
      %p289 = pneg %p288
      // Predicated region
      $region45: #{tpu_custom_call.1} parent=5 // pred_check
        _
      $region46: #{tpu_custom_call.1} parent=5 // pred_check_branch
        %291 = sbr.rel (%p288) target = $region48
      $region47: #{tpu_custom_call.1} parent=5 // pred_region
        %s292 = ssub.s32 %s21, 1
        %s293 = sand.u32 %s34, 1
        %s294 = scalar_lea.sflag [#allocation3], %s293
        %s295 = sand.u32 %s34, 1
        %s296 = smul.addr %s295, 8
        %s297 = scalar_lea.vmem [#allocation2], %s296
        // Predicated region
        $region49: #{tpu_custom_call.1} parent=47 // pred_check
          %p298 = pneg %p47
        $region50: #{tpu_custom_call.1} parent=47 // pred_check_branch
          %300 = sbr.rel (%p298) target = $region52
        $region51: #{tpu_custom_call.1} parent=47 // pred_region
          %302 = dma.done %s294, 128
        $region52: #{tpu_custom_call.1} parent=47 // pred_fallthru
          _
        // Predicated region
        $region53: #{tpu_custom_call.1} parent=47 // pred_check
          %p303 = pneg %p68
        $region54: #{tpu_custom_call.1} parent=47 // pred_check_branch
          %305 = sbr.rel (%p303) target = $region56
        $region55: #{tpu_custom_call.1} parent=47 // pred_region
          %307 = dma.done [#allocation6], 16
        $region56: #{tpu_custom_call.1} parent=47 // pred_fallthru
          _
        // Predicated region
        $region57: #{tpu_custom_call.1} parent=47 // pred_check
          %p308 = pneg %p110
        $region58: #{tpu_custom_call.1} parent=47 // pred_check_branch
          %310 = sbr.rel (%p308) target = $region60
        $region59: #{tpu_custom_call.1} parent=47 // pred_region
          %312 = dma.done [#allocation6], 256
        $region60: #{tpu_custom_call.1} parent=47 // pred_fallthru
          _
        // Predicated region
        $region61: #{tpu_custom_call.1} parent=47 // pred_check
          %p313 = pneg %p152
        $region62: #{tpu_custom_call.1} parent=47 // pred_check_branch
          %315 = sbr.rel (%p313) target = $region64
        $region63: #{tpu_custom_call.1} parent=47 // pred_region
          %317 = dma.done [#allocation9], 256
        $region64: #{tpu_custom_call.1} parent=47 // pred_fallthru
          _
        %s318 = sand.u32 %s34, 1
        %s319 = scalar_lea.sflag [#allocation3], %s318
        %s320 = sand.u32 %s34, 1
        %s321 = smul.addr %s320, 8
        %s322 = scalar_lea.vmem [#allocation2], %s321
        %p323 = pneg %p47
        %p324 = pneg %p44
        %p325 = pneg %p68
        %p326 = pneg %p65
        %p327 = pneg %p89
        %p328 = pneg %p86
        %p329 = pneg %p110
        %p330 = pneg %p107
        %p331 = pneg %p131
        %p332 = pneg %p128
        %p333 = pneg %p152
        %p334 = pneg %p149
        %p335 = pneg %p173
        %p336 = pneg %p170
        %p337 = pneg %p199
        %p338 = pneg %p196
        %s339 = sand.u32 %s186, 1
        %s340 = scalar_lea.sflag [#allocation4], %s339
        %s341 = sand.u32 %s186, 1
        %s342 = smul.addr %s341, 8
        %s343 = scalar_lea.vmem [#allocation10], %s342
        %v345 = vld [vmem:[%s297] sm:$0xff]
        %v346 = vld [vmem:[#allocation5] sm:$0x1]
        %v347 = vld [vmem:[%s2] sm:$0x1]
        %vm348 = vcmask 261120
        %v349 = vsel %vm348, %v345, 0.0
        %350 = vadd.xlane.f32.xlu0 %v349
        %v351 = vpop.xlane.xlu0 %350
        %v352 = vrcp.pop 32.0
        %v353 = vmul.f32 32.0, %v352
        %v354 = vsub.f32 1.0, %v353
        %v355 = vmul.f32 %v352, %v354
        %v356 = vadd.f32 %v352, %v355
        %vm357 = vweird.f32 %v352
        %v358 = vsel %vm357, %v352, %v356
        %v359 = vmul.f32 %v351, %v358
        %v360 = vsub.f32 %v345, %v359
        %v361 = vmul.f32 %v360, %v360
        %v362 = vsel %vm348, %v361, 0.0
        %363 = vadd.xlane.f32.xlu0 %v362
        %v364 = vpop.xlane.xlu0 %363
        %v365 = vmul.f32 %v364, 0.032258064
        %v366 = vrsqrt.pop %v365
        %v367 = vmul.f32 %v366, %v365
        %v368 = vmul.f32 %v367, %v366
        %v369 = vmul.f32 0.5, %v368
        %v370 = vsub.f32 1.5, %v369
        %v371 = vmul.f32 %v366, %v370
        %v372 = vmul.f32 %v365, %v371
        %vm373 = vcmp.eq.f32.partialorder %v365, inf
        %v374 = vsel %vm373, %v365, %v372
        %vm375 = vcmp.eq.f32.partialorder %v365, 0.0
        %v376 = vand.u32 %v365, 2147483648
        %v377 = vsel %vm375, %v376, %v374
        %v379 = vperm.slane %v346, 0
        %v381 = vmul.f32 %v379, %v360
        %v382 = vadd.f32 %v377, 1e-06
        %v383 = vrcp.pop %v382
        %v384 = vmul.f32 %v382, %v383
        %v385 = vsub.f32 1.0, %v384
        %v386 = vmul.f32 %v383, %v385
        %v387 = vadd.f32 %v383, %v386
        %vm388 = vweird.f32 %v382
        %vm389 = vweird.f32 %v383
        %vm390 = vmor %vm388, %vm389
        %v391 = vsel %vm390, %v383, %v387
        %v392 = vand.u32 2147483647, %v382
        %vm393 = vcmp.eq.f32.partialorder %v392, 8.507059e+37
        %v394 = vand.u32 %v382, 2147483648
        %v395 = vor.u32 1.1754944e-38, %v394
        %v396 = vsel %vm393, %v395, %v391
        %v397 = vmul.f32 %v381, %v396
        %v399 = vperm.slane %v347, 0
        %v401 = vadd.f32 %v397, %v399
        %v402 = vpack.c.bf16 %v401, %v401
        %v403 = vld [vmem:[#allocation7] sm:$0xf]
        %v404 = vld [vmem:[#allocation7 + $0x4] sm:$0xf]
        %v405 = vld [vmem:[#allocation7 + $0x8] sm:$0xf]
        %v406 = vld [vmem:[#allocation7 + $0xc] sm:$0xf]
        %v407 = vld [vmem:[%s4] sm:$0x1]
        %v409 = vperm.slane %v407, 0
        %v415 = vunpack.c.l.b16 %v403
        %v416 = vunpack.c.l.b16 %v404
        %v417 = vunpack.c.l.b16 %v405
        %v418 = vunpack.c.l.b16 %v406
        %v419 = vpack.c.b16 %v416, %v415
        %v420 = vpack.c.b16 %v418, %v417
        %v424 = vsel %vm348, %v402, 0
        %426 = vmatpush.bf16.msra.mxu0 0
        %427 = vmatpush.bf16.msra.mxu0 0
        %428 = vmatpush.bf16.msra.mxu0 0
        %429 = vmatpush.bf16.msra.mxu0 0
        %430 = vmatpush.bf16.msra.mxu0 0
        %431 = vmatpush.bf16.msra.mxu0 0
        %432 = vmatpush.bf16.msra.mxu0 %v420
        %433 = vmatpush.bf16.msra.mxu0 %v419
        %434 = vmatmul.bf16.gmra.mxu0 %v424
        %v435 = vpop.f32.mrf.mxu0
        %v436 = vadd.f32 %v409, %v435
        %v437 = vpop.f32.mrf.mxu0
        %438 = vdwg.mxu0
        %v439 = vpack.c.bf16 %v436, %v436
        %v440 = vld [vmem:[%s6] sm:$0x1]
        %v442 = vperm.slane %v440, 0
        %v444 = vadd.f32 %v345, %v442
        %v446 = vunpack.c.l.b16 %v439
        %v447 = vpack.c.b16 %v446, %v446
        %448 = vrot.lane.b32.xlu0 %v447, 96
        %v449 = vpop.permute.xlu0 %448
        %vm450 = vcmask 64512
        %v452 = vsel %vm450, %v439, 0
        %v455 = vsel %vm450, %v449, 0
        %457 = vmatpush.bf16.xpose.msra.mxu0 0
        %458 = vmatpush.bf16.xpose.msra.mxu0 0
        %459 = vmatpush.bf16.xpose.msra.mxu0 0
        %460 = vmatpush.bf16.xpose.msra.mxu0 0
        %461 = vmatpush.bf16.xpose.msra.mxu0 0
        %462 = vmatpush.bf16.xpose.msra.mxu0 0
        %463 = vmatpush.bf16.xpose.msra.mxu0 0
        %464 = vmatpush.bf16.xpose.msra.mxu0 %v455
        %465 = vmatmul.bf16.gmra.mxu0 %v452
        %v466 = vpop.f32.mrf.mxu0
        %v467 = vadd.f32 0.0, %v466
        %v468 = vpop.f32.mrf.mxu0
        %469 = vdwg.mxu0
        %v470 = vmul.f32 %v467, 0.35355338
        %v471 = vsel %vm450, %v470, -inf
        %472 = vmax.xlane.f32.xlu0 %v471
        %v473 = vpop.xlane.xlu0 %472
        %v474 = vsub.f32 %v470, %v473
        %v475 = vmul.f32 %v474, 1.442695
        %v476 = vpow.pop %v475
        %v477 = vsel %vm450, %v476, 0.0
        %478 = vadd.xlane.f32.xlu0 %v477
        %v479 = vpop.xlane.xlu0 %478
        %v480 = vrcp.pop %v479
        %v481 = vmul.f32 %v479, %v480
        %v482 = vsub.f32 1.0, %v481
        %v483 = vmul.f32 %v480, %v482
        %v484 = vadd.f32 %v480, %v483
        %vm485 = vweird.f32 %v479
        %vm486 = vweird.f32 %v480
        %vm487 = vmor %vm485, %vm486
        %v488 = vsel %vm487, %v480, %v484
        %v489 = vand.u32 2147483647, %v479
        %vm490 = vcmp.eq.f32.partialorder %v489, 8.507059e+37
        %v491 = vand.u32 %v479, 2147483648
        %v492 = vor.u32 1.1754944e-38, %v491
        %v493 = vsel %vm490, %v492, %v488
        %v494 = vmul.f32 %v476, %v493
        %v495 = vpack.c.bf16 %v494, %v494
        %496 = vrot.lane.b32.xlu0 %v447, 64
        %v497 = vpop.permute.xlu0 %496
        %v499 = vsel %vm450, %v495, 0
        %vm501 = vcmask 1043456
        %v503 = vsel %vm501, %v497, 0
        %505 = vmatpush.bf16.msra.mxu0 0
        %506 = vmatpush.bf16.msra.mxu0 0
        %507 = vmatpush.bf16.msra.mxu0 0
        %508 = vmatpush.bf16.msra.mxu0 0
        %509 = vmatpush.bf16.msra.mxu0 0
        %510 = vmatpush.bf16.msra.mxu0 0
        %511 = vmatpush.bf16.msra.mxu0 0
        %512 = vmatpush.bf16.msra.mxu0 %v503
        %513 = vmatmul.bf16.gmra.mxu0 %v499
        %v514 = vpop.f32.mrf.mxu0
        %v515 = vadd.f32 0.0, %v514
        %v516 = vpop.f32.mrf.mxu0
        %517 = vdwg.mxu0
        %v518 = vpack.c.bf16 %v515, %v515
        %v519 = vld [vmem:[#allocation8] sm:$0xf]
        %v521 = vsel %vm450, %v518, 0
        %v524 = vsel %vm501, %v519, 0
        %526 = vmatpush.bf16.msra.mxu0 0
        %527 = vmatpush.bf16.msra.mxu0 0
        %528 = vmatpush.bf16.msra.mxu0 0
        %529 = vmatpush.bf16.msra.mxu0 0
        %530 = vmatpush.bf16.msra.mxu0 0
        %531 = vmatpush.bf16.msra.mxu0 0
        %532 = vmatpush.bf16.msra.mxu0 0
        %533 = vmatpush.bf16.msra.mxu0 %v524
        %534 = vmatmul.bf16.gmra.mxu0 %v521
        %v535 = vpop.f32.mrf.mxu0
        %v536 = vadd.f32 0.0, %v535
        %v537 = vpop.f32.mrf.mxu0
        %538 = vdwg.mxu0
        %v539 = vadd.f32 %v444, %v536
        %540 = vrot.lane.b32.xlu0 %v447, 120
        %v541 = vpop.permute.xlu0 %540
        %542 = vrot.lane.b32.xlu0 %v447, 88
        %v543 = vpop.permute.xlu0 %542
        %v545 = vsel %vm450, %v541, 0
        %v548 = vsel %vm450, %v543, 0
        %550 = vmatpush.bf16.xpose.msra.mxu0 0
        %551 = vmatpush.bf16.xpose.msra.mxu0 0
        %552 = vmatpush.bf16.xpose.msra.mxu0 0
        %553 = vmatpush.bf16.xpose.msra.mxu0 0
        %554 = vmatpush.bf16.xpose.msra.mxu0 0
        %555 = vmatpush.bf16.xpose.msra.mxu0 0
        %556 = vmatpush.bf16.xpose.msra.mxu0 0
        %557 = vmatpush.bf16.xpose.msra.mxu0 %v548
        %558 = vmatmul.bf16.gmra.mxu0 %v545
        %v559 = vpop.f32.mrf.mxu0
        %v560 = vadd.f32 0.0, %v559
        %v561 = vpop.f32.mrf.mxu0
        %562 = vdwg.mxu0
        %v563 = vmul.f32 %v560, 0.35355338
        %v564 = vsel %vm450, %v563, -inf
        %565 = vmax.xlane.f32.xlu0 %v564
        %v566 = vpop.xlane.xlu0 %565
        %v567 = vsub.f32 %v563, %v566
        %v568 = vmul.f32 %v567, 1.442695
        %v569 = vpow.pop %v568
        %v570 = vsel %vm450, %v569, 0.0
        %571 = vadd.xlane.f32.xlu0 %v570
        %v572 = vpop.xlane.xlu0 %571
        %v573 = vrcp.pop %v572
        %v574 = vmul.f32 %v572, %v573
        %v575 = vsub.f32 1.0, %v574
        %v576 = vmul.f32 %v573, %v575
        %v577 = vadd.f32 %v573, %v576
        %vm578 = vweird.f32 %v572
        %vm579 = vweird.f32 %v573
        %vm580 = vmor %vm578, %vm579
        %v581 = vsel %vm580, %v573, %v577
        %v582 = vand.u32 2147483647, %v572
        %vm583 = vcmp.eq.f32.partialorder %v582, 8.507059e+37
        %v584 = vand.u32 %v572, 2147483648
        %v585 = vor.u32 1.1754944e-38, %v584
        %v586 = vsel %vm583, %v585, %v581
        %v587 = vmul.f32 %v569, %v586
        %v588 = vpack.c.bf16 %v587, %v587
        %589 = vrot.lane.b32.xlu0 %v447, 56
        %v590 = vpop.permute.xlu0 %589
        %v592 = vsel %vm450, %v588, 0
        %v595 = vsel %vm501, %v590, 0
        %597 = vmatpush.bf16.msra.mxu0 0
        %598 = vmatpush.bf16.msra.mxu0 0
        %599 = vmatpush.bf16.msra.mxu0 0
        %600 = vmatpush.bf16.msra.mxu0 0
        %601 = vmatpush.bf16.msra.mxu0 0
        %602 = vmatpush.bf16.msra.mxu0 0
        %603 = vmatpush.bf16.msra.mxu0 0
        %604 = vmatpush.bf16.msra.mxu0 %v595
        %605 = vmatmul.bf16.gmra.mxu0 %v592
        %v606 = vpop.f32.mrf.mxu0
        %v607 = vadd.f32 0.0, %v606
        %v608 = vpop.f32.mrf.mxu0
        %609 = vdwg.mxu0
        %v610 = vpack.c.bf16 %v607, %v607
        %s611 = scalar_lea.vmem [#allocation8], 4
        %v612 = vld [vmem:[%s611] sm:$0xf]
        %v614 = vsel %vm450, %v610, 0
        %v617 = vsel %vm501, %v612, 0
        %619 = vmatpush.bf16.msra.mxu0 0
        %620 = vmatpush.bf16.msra.mxu0 0
        %621 = vmatpush.bf16.msra.mxu0 0
        %622 = vmatpush.bf16.msra.mxu0 0
        %623 = vmatpush.bf16.msra.mxu0 0
        %624 = vmatpush.bf16.msra.mxu0 0
        %625 = vmatpush.bf16.msra.mxu0 0
        %626 = vmatpush.bf16.msra.mxu0 %v617
        %627 = vmatmul.bf16.gmra.mxu0 %v614
        %v628 = vpop.f32.mrf.mxu0
        %v629 = vadd.f32 0.0, %v628
        %v630 = vpop.f32.mrf.mxu0
        %631 = vdwg.mxu0
        %v632 = vadd.f32 %v539, %v629
        %633 = vrot.lane.b32.xlu0 %v447, 112
        %v634 = vpop.permute.xlu0 %633
        %635 = vrot.lane.b32.xlu0 %v447, 80
        %v636 = vpop.permute.xlu0 %635
        %v638 = vsel %vm450, %v634, 0
        %v641 = vsel %vm450, %v636, 0
        %643 = vmatpush.bf16.xpose.msra.mxu0 0
        %644 = vmatpush.bf16.xpose.msra.mxu0 0
        %645 = vmatpush.bf16.xpose.msra.mxu0 0
        %646 = vmatpush.bf16.xpose.msra.mxu0 0
        %647 = vmatpush.bf16.xpose.msra.mxu0 0
        %648 = vmatpush.bf16.xpose.msra.mxu0 0
        %649 = vmatpush.bf16.xpose.msra.mxu0 0
        %650 = vmatpush.bf16.xpose.msra.mxu0 %v641
        %651 = vmatmul.bf16.gmra.mxu0 %v638
        %v652 = vpop.f32.mrf.mxu0
        %v653 = vadd.f32 0.0, %v652
        %v654 = vpop.f32.mrf.mxu0
        %655 = vdwg.mxu0
        %v656 = vmul.f32 %v653, 0.35355338
        %v657 = vsel %vm450, %v656, -inf
        %658 = vmax.xlane.f32.xlu0 %v657
        %v659 = vpop.xlane.xlu0 %658
        %v660 = vsub.f32 %v656, %v659
        %v661 = vmul.f32 %v660, 1.442695
        %v662 = vpow.pop %v661
        %v663 = vsel %vm450, %v662, 0.0
        %664 = vadd.xlane.f32.xlu0 %v663
        %v665 = vpop.xlane.xlu0 %664
        %v666 = vrcp.pop %v665
        %v667 = vmul.f32 %v665, %v666
        %v668 = vsub.f32 1.0, %v667
        %v669 = vmul.f32 %v666, %v668
        %v670 = vadd.f32 %v666, %v669
        %vm671 = vweird.f32 %v665
        %vm672 = vweird.f32 %v666
        %vm673 = vmor %vm671, %vm672
        %v674 = vsel %vm673, %v666, %v670
        %v675 = vand.u32 2147483647, %v665
        %vm676 = vcmp.eq.f32.partialorder %v675, 8.507059e+37
        %v677 = vand.u32 %v665, 2147483648
        %v678 = vor.u32 1.1754944e-38, %v677
        %v679 = vsel %vm676, %v678, %v674
        %v680 = vmul.f32 %v662, %v679
        %v681 = vpack.c.bf16 %v680, %v680
        %682 = vrot.lane.b32.xlu0 %v447, 48
        %v683 = vpop.permute.xlu0 %682
        %v685 = vsel %vm450, %v681, 0
        %v688 = vsel %vm501, %v683, 0
        %690 = vmatpush.bf16.msra.mxu0 0
        %691 = vmatpush.bf16.msra.mxu0 0
        %692 = vmatpush.bf16.msra.mxu0 0
        %693 = vmatpush.bf16.msra.mxu0 0
        %694 = vmatpush.bf16.msra.mxu0 0
        %695 = vmatpush.bf16.msra.mxu0 0
        %696 = vmatpush.bf16.msra.mxu0 0
        %697 = vmatpush.bf16.msra.mxu0 %v688
        %698 = vmatmul.bf16.gmra.mxu0 %v685
        %v699 = vpop.f32.mrf.mxu0
        %v700 = vadd.f32 0.0, %v699
        %v701 = vpop.f32.mrf.mxu0
        %702 = vdwg.mxu0
        %v703 = vpack.c.bf16 %v700, %v700
        %s704 = scalar_lea.vmem [#allocation8], 8
        %v705 = vld [vmem:[%s704] sm:$0xf]
        %v707 = vsel %vm450, %v703, 0
        %v710 = vsel %vm501, %v705, 0
        %712 = vmatpush.bf16.msra.mxu0 0
        %713 = vmatpush.bf16.msra.mxu0 0
        %714 = vmatpush.bf16.msra.mxu0 0
        %715 = vmatpush.bf16.msra.mxu0 0
        %716 = vmatpush.bf16.msra.mxu0 0
        %717 = vmatpush.bf16.msra.mxu0 0
        %718 = vmatpush.bf16.msra.mxu0 0
        %719 = vmatpush.bf16.msra.mxu0 %v710
        %720 = vmatmul.bf16.gmra.mxu0 %v707
        %v721 = vpop.f32.mrf.mxu0
        %v722 = vadd.f32 0.0, %v721
        %v723 = vpop.f32.mrf.mxu0
        %724 = vdwg.mxu0
        %v725 = vadd.f32 %v632, %v722
        %726 = vrot.lane.b32.xlu0 %v447, 104
        %v727 = vpop.permute.xlu0 %726
        %728 = vrot.lane.b32.xlu0 %v447, 72
        %v729 = vpop.permute.xlu0 %728
        %v731 = vsel %vm450, %v727, 0
        %v734 = vsel %vm450, %v729, 0
        %736 = vmatpush.bf16.xpose.msra.mxu0 0
        %737 = vmatpush.bf16.xpose.msra.mxu0 0
        %738 = vmatpush.bf16.xpose.msra.mxu0 0
        %739 = vmatpush.bf16.xpose.msra.mxu0 0
        %740 = vmatpush.bf16.xpose.msra.mxu0 0
        %741 = vmatpush.bf16.xpose.msra.mxu0 0
        %742 = vmatpush.bf16.xpose.msra.mxu0 0
        %743 = vmatpush.bf16.xpose.msra.mxu0 %v734
        %744 = vmatmul.bf16.gmra.mxu0 %v731
        %v745 = vpop.f32.mrf.mxu0
        %v746 = vadd.f32 0.0, %v745
        %v747 = vpop.f32.mrf.mxu0
        %748 = vdwg.mxu0
        %v749 = vmul.f32 %v746, 0.35355338
        %v750 = vsel %vm450, %v749, -inf
        %751 = vmax.xlane.f32.xlu0 %v750
        %v752 = vpop.xlane.xlu0 %751
        %v753 = vsub.f32 %v749, %v752
        %v754 = vmul.f32 %v753, 1.442695
        %v755 = vpow.pop %v754
        %v756 = vsel %vm450, %v755, 0.0
        %757 = vadd.xlane.f32.xlu0 %v756
        %v758 = vpop.xlane.xlu0 %757
        %v759 = vrcp.pop %v758
        %v760 = vmul.f32 %v758, %v759
        %v761 = vsub.f32 1.0, %v760
        %v762 = vmul.f32 %v759, %v761
        %v763 = vadd.f32 %v759, %v762
        %vm764 = vweird.f32 %v758
        %vm765 = vweird.f32 %v759
        %vm766 = vmor %vm764, %vm765
        %v767 = vsel %vm766, %v759, %v763
        %v768 = vand.u32 2147483647, %v758
        %vm769 = vcmp.eq.f32.partialorder %v768, 8.507059e+37
        %v770 = vand.u32 %v758, 2147483648
        %v771 = vor.u32 1.1754944e-38, %v770
        %v772 = vsel %vm769, %v771, %v767
        %v773 = vmul.f32 %v755, %v772
        %v774 = vpack.c.bf16 %v773, %v773
        %775 = vrot.lane.b32.xlu0 %v447, 40
        %v776 = vpop.permute.xlu0 %775
        %v778 = vsel %vm450, %v774, 0
        %v781 = vsel %vm501, %v776, 0
        %783 = vmatpush.bf16.msra.mxu0 0
        %784 = vmatpush.bf16.msra.mxu0 0
        %785 = vmatpush.bf16.msra.mxu0 0
        %786 = vmatpush.bf16.msra.mxu0 0
        %787 = vmatpush.bf16.msra.mxu0 0
        %788 = vmatpush.bf16.msra.mxu0 0
        %789 = vmatpush.bf16.msra.mxu0 0
        %790 = vmatpush.bf16.msra.mxu0 %v781
        %791 = vmatmul.bf16.gmra.mxu0 %v778
        %v792 = vpop.f32.mrf.mxu0
        %v793 = vadd.f32 0.0, %v792
        %v794 = vpop.f32.mrf.mxu0
        %795 = vdwg.mxu0
        %v796 = vpack.c.bf16 %v793, %v793
        %s797 = scalar_lea.vmem [#allocation8], 12
        %v798 = vld [vmem:[%s797] sm:$0xf]
        %v800 = vsel %vm450, %v796, 0
        %v803 = vsel %vm501, %v798, 0
        %805 = vmatpush.bf16.msra.mxu0 0
        %806 = vmatpush.bf16.msra.mxu0 0
        %807 = vmatpush.bf16.msra.mxu0 0
        %808 = vmatpush.bf16.msra.mxu0 0
        %809 = vmatpush.bf16.msra.mxu0 0
        %810 = vmatpush.bf16.msra.mxu0 0
        %811 = vmatpush.bf16.msra.mxu0 0
        %812 = vmatpush.bf16.msra.mxu0 %v803
        %813 = vmatmul.bf16.gmra.mxu0 %v800
        %v814 = vpop.f32.mrf.mxu0
        %v815 = vadd.f32 0.0, %v814
        %v816 = vpop.f32.mrf.mxu0
        %817 = vdwg.mxu0
        %v818 = vadd.f32 %v725, %v815
        %819 = vst.msk [vmem:[%s343] sm:$0xff] %vm348, %v818
        %s820 = sand.u32 %s186, 1
        %s821 = scalar_lea.sflag [#allocation4], %s820
        %s822 = sand.u32 %s186, 1
        %s823 = smul.addr %s822, 8
        %s824 = scalar_lea.vmem [#allocation10], %s823
        // Predicated region
        $region65: #{tpu_custom_call.1} parent=47 // pred_check
          %p825 = pneg %p196
        $region66: #{tpu_custom_call.1} parent=47 // pred_check_branch
          %827 = sbr.rel (%p825) target = $region68
        $region67: #{tpu_custom_call.1} parent=47 // pred_region
          %829 = vsyncadd %s821, 0
          %s830 = smul.addr %s26, 8
          %s831 = scalar_lea.hbm %s7, %s830
          %s833 = sshll.u32 %s824, 4
          %s834 = int_to_ptr.vmem [resolvable:$true] %s833
          %s835 = sshll.u32 %s831, 4
          %s836 = int_to_ptr.hbm [resolvable:$true] %s835
          %838 = dma.vmem_to_hbm [thread:$0]  %s834, 128, %s836, %s821
        $region68: #{tpu_custom_call.1} parent=47 // pred_fallthru
          _
      $region48: #{tpu_custom_call.1} parent=5 // pred_fallthru
        _
      %p839 = scmp.le.s32.totalorder 2, %s21
      // Predicated region
      $region69: #{tpu_custom_call.1} parent=5 // pred_check
        %p840 = pneg %p839
      $region70: #{tpu_custom_call.1} parent=5 // pred_check_branch
        %842 = sbr.rel (%p840) target = $region72
      $region71: #{tpu_custom_call.1} parent=5 // pred_region
        %s843 = ssub.s32 %s21, 2
        // Predicated region
        $region73: #{tpu_custom_call.1} parent=71 // pred_check
          %p844 = pneg %p202
        $region74: #{tpu_custom_call.1} parent=71 // pred_check_branch
          %846 = sbr.rel (%p844) target = $region76
        $region75: #{tpu_custom_call.1} parent=71 // pred_region
          %s847 = sand.u32 %s187, 1
          %s848 = scalar_lea.sflag [#allocation4], %s847
          %s849 = sand.u32 %s187, 1
          %s850 = smul.addr %s849, 8
          %s851 = scalar_lea.vmem [#allocation10], %s850
          %853 = dma.done %s848, 128
        $region76: #{tpu_custom_call.1} parent=71 // pred_fallthru
          _
      $region72: #{tpu_custom_call.1} parent=5 // pred_fallthru
        _
    $region6: #{tpu_custom_call.1} parent=1 // loop_footer
      %s25 = sadd.s32 1, %s21
    $region7: #{tpu_custom_call.1} parent=1 // loop_footer_branch
      %20 = sbr.rel target = $region3
    $region8: #{tpu_custom_call.1} parent=1 // loop_exit
      _
    %854 = vsyncpa [#allocation3], 1
    %s855 = scalar_lea.sflag [#allocation3], 1
    %856 = vsyncpa %s855, 1
    %857 = vsyncpa [#allocation6], 1
    %858 = vsyncpa [#allocation9], 1
    %859 = vsyncpa [#allocation4], 1
    %s860 = scalar_lea.sflag [#allocation4], 1
    %861 = vsyncpa %s860, 1

</llo_original>
